<compile_context>
chip_gen: v6e
topology: v6e:2x2x1
jax: 0.10.0
libtpu: 0.0.40
codegen_flags: <defaults>
</compile_context>

<pallas_src>
import functools

import jax
import jax.numpy as jnp
from jax import lax
from jax.experimental import pallas as pl
from jax.experimental.pallas import tpu as pltpu

_I32_MAX = int(jnp.iinfo(jnp.int32).max)


def _pwlnn_kernel(xhat_ref, a_ref, wbt_ref, o_ref, *, k: int, n_ctrs: int, idx_bits: int):
    # xhat_ref: (g, TN)              augmented samples on lanes: rows [x_0..x_{d_in-1}, 1, 0...]
    # a_ref:    (n_ctrs_pad, g)      distance rows: [-2*c_j | ||c_j||^2 | 0...]
    # wbt_ref:  (g*d_out, n_ctrs_pad) row o*g+r -> wts[:, r, o] (r<d_in), B[:, o] (r==d_in), 0 (pad)
    # o_ref:    (d_out, TN)          output tile, samples on lanes
    g, tn = xhat_ref.shape
    n_ctrs_pad = a_ref.shape[0]
    d_out = o_ref.shape[0]

    # Hoist all (tiny) parameter / input loads once; slice values, not refs, below.
    xhat = xhat_ref[...].astype(jnp.float32)                     # (g, TN)
    a = a_ref[...]                                               # (n_ctrs_pad, g)
    wbt = wbt_ref[...]                                           # (g*d_out, n_ctrs_pad)

    # --- squared distances via the norm expansion, cross term on the MXU --------------
    #   ||x - c_j||^2 = (||c_j||^2 - 2 c_j.x) + ||x||^2 = (A @ xhat) + ||x||^2
    score = jnp.dot(a, xhat, preferred_element_type=jnp.float32,
                    precision=lax.Precision.HIGHEST)             # (n_ctrs_pad, TN)
    xnorm = jnp.sum(xhat * xhat, axis=0, keepdims=True) - 1.0    # (1, TN) (remove the ones-row)
    dist = jnp.maximum(score + xnorm, 0.0)                       # clamp cancellation error -> >= 0

    # --- packed-key top-k: one reduction per neighbor, index tie-break built in -------
    # bitcast of a non-negative f32 is order preserving as int32; clear the low idx_bits
    # mantissa bits and OR in the row index so every column has a unique minimum key.
    bits = pltpu.bitcast(dist, jnp.int32)
    row_idx = lax.broadcasted_iota(jnp.int32, (n_ctrs_pad, tn), 0)
    key = (bits & (~((1 << idx_bits) - 1))) | row_idx
    if n_ctrs_pad != n_ctrs:                                     # dummy (padded) centers never win
        key = jnp.where(row_idx >= n_ctrs, _I32_MAX, key)

    sel = jnp.zeros((n_ctrs_pad, tn), jnp.float32)
    for _ in range(k):                                           # k is small & static
        min_key = jnp.min(key, axis=0, keepdims=True)            # (1, TN)
        onehot = key == min_key                                  # exactly one True per column
        sel = sel + onehot.astype(jnp.float32)
        key = jnp.where(onehot, _I32_MAX, key)

    # --- gather-free neighbor sum: one MXU matmul over the center axis ----------------
    awbt = jnp.dot(wbt, sel, preferred_element_type=jnp.float32,
                   precision=lax.Precision.HIGHEST)              # (g*d_out, TN)
    # NOTE: review suggests bf16 sel + DEFAULT precision here; kept f32/HIGHEST since the
    # matmul is tiny and this preserves f32-exact accumulation for the tolerance check.

    # --- sublane-dense epilogue: per-output groups of g rows contract against xhat ----
    # y[o, s] = sum_r awbt[o*g + r, s] * xhat[r, s]
    y = jnp.sum(awbt.reshape(d_out, g, tn) * xhat[None, :, :], axis=1)   # (d_out, TN)
    o_ref[...] = y.astype(o_ref.dtype)                                   # full-lane store


def _round_up(x: int, m: int) -> int:
    return ((x + m - 1) // m) * m


def _vmem_capacity_bytes(default: int = 128 << 20) -> int:
    try:
        info = pltpu.get_tpu_info()
        for attr in ("vmem_capacity_bytes", "vmem_bytes", "vmem_size_bytes"):
            v = getattr(info, attr, None)
            if v:
                return int(v)
    except Exception:
        pass
    return default


def pwlnn_forward(x, ctrs, wts, offsets, *, k: int = 1, tn: int | None = None):
    """Pallas implementation of PWLNNFcn.forward (all functions used, no dropout).

    Args:
      x:       (n_smps, d_in)
      ctrs:    (n_ctrs, d_in)
      wts:     (n_ctrs, d_in, d_out)
      offsets: (n_ctrs, d_out)
      k:       number of nearest-neighbor functions to sum.
      tn:      optional samples-per-grid-step override (multiple of 128); auto-sized otherwise.

    Returns:
      y: (n_smps, d_out)
    """
    n, d_in = x.shape
    n_ctrs, d_in_c = ctrs.shape
    d_out = offsets.shape[1]
    assert d_in_c == d_in and wts.shape == (n_ctrs, d_in, d_out)
    assert offsets.shape == (n_ctrs, d_out)
    assert 1 <= k <= n_ctrs

    f32 = jnp.float32
    out_dtype = x.dtype

    g = _round_up(d_in + 1, 8)                     # augmented-feature rows: [x, 1, zero-pad]
    n_ctrs_pad = _round_up(n_ctrs, 8)
    idx_bits = max(1, (n_ctrs_pad - 1).bit_length())

    ctrs_f = ctrs.astype(f32)
    wts_f = wts.astype(f32)
    off_f = offsets.astype(f32)

    # Distance matrix A such that A @ [x; 1; 0...] = -2 c.x + ||c||^2 (padded rows are zero;
    # they are masked out of the selection inside the kernel).
    cnorm = jnp.sum(ctrs_f * ctrs_f, axis=1, keepdims=True)            # (n_ctrs, 1)
    a = jnp.concatenate([-2.0 * ctrs_f, cnorm], axis=1)                # (n_ctrs, d_in+1)
    a = jnp.pad(a, ((0, n_ctrs_pad - n_ctrs), (0, g - d_in - 1)))      # (n_ctrs_pad, g)

    # Grouped [W | B] table: for output o, rows [wts[:, 0..d_in-1, o], B[:, o], 0...]
    # where B[j, o] = offsets[j, o] - sum_i wts[j, i, o] * ctrs[j, i].
    b = off_f - jnp.einsum("jio,ji->jo", wts_f, ctrs_f)                # (n_ctrs, d_out)
    wb = jnp.concatenate([wts_f, b[:, None, :]], axis=1)               # (n_ctrs, d_in+1, d_out)
    wb = jnp.pad(wb, ((0, n_ctrs_pad - n_ctrs), (0, g - d_in - 1), (0, 0)))
    wbt = jnp.transpose(wb, (2, 1, 0)).reshape(d_out * g, n_ctrs_pad)  # row index = o*g + r

    # --- tile sizing from the real VMEM live set, gated per TPU generation -------------
    vmem_cap = _vmem_capacity_bytes()                                   # 128 MiB v5e/v6e, 64 MiB v7x
    vmem_limit = int(min(64 << 20, max(32 << 20, vmem_cap // 2)))       # 64 MiB v5e/v6e, 32 MiB v7x
    # live (.., TN) f32/i32 columns: ~8x(n_ctrs_pad) temps + awbt/product + xhat/out buffers
    bytes_per_col = 4 * (8 * n_ctrs_pad + 3 * g * d_out + 6 * g + 4 * d_out)
    tn_vmem = max(128, ((int(vmem_limit * 0.75) // bytes_per_col) // 128) * 128)
    tn_steps = max(128, _round_up(pl.cdiv(n, 8), 128))   # aim for >= 8 grid steps (v7x: 2 TCs)
    tn_eff = min(tn_vmem, 16384, tn_steps)
    if tn is not None:
        assert tn % 128 == 0
        tn_eff = min(tn, tn_vmem)
    grid_n = pl.cdiv(n, tn_eff)
    n_pad = grid_n * tn_eff

    # Lane-dense augmented input (no zeros+scatter: concatenate + single pad).
    xhat = jnp.concatenate([x.astype(f32).T, jnp.ones((1, n), f32)], axis=0)   # (d_in+1, n)
    xhat = jnp.pad(xhat, ((0, g - d_in - 1), (0, n_pad - n)))                  # (g, n_pad)

    out = pl.pallas_call(
        functools.partial(_pwlnn_kernel, k=k, n_ctrs=n_ctrs, idx_bits=idx_bits),
        out_shape=jax.ShapeDtypeStruct((d_out, n_pad), out_dtype),
        grid_spec=pltpu.PrefetchScalarGridSpec(
            num_scalar_prefetch=0,
            grid=(grid_n,),
            in_specs=[
                pl.BlockSpec((g, tn_eff), lambda i: (0, i)),               # augmented x (lane-dense)
                pl.BlockSpec((n_ctrs_pad, g), lambda i: (0, 0)),           # distance matrix (replicated)
                pl.BlockSpec((d_out * g, n_ctrs_pad), lambda i: (0, 0)),   # grouped [W | B] (replicated)
            ],
            out_specs=pl.BlockSpec((d_out, tn_eff), lambda i: (0, i)),
        ),
        compiler_params=pltpu.CompilerParams(
            dimension_semantics=("parallel",),
            vmem_limit_bytes=vmem_limit,
        ),
    )(xhat, a, wbt)

    return out[:, :n].T                                                    # (n_smps, d_out)


if __name__ == "__main__":
    root_key = jax.random.PRNGKey(0)

    def reference(x, ctrs, wts, offsets, k):
        # Pure-JAX mirror of PWLNNFcn.forward (n_used_fcns = n_fcns).
        d2 = jnp.sum((x[:, None, :] - ctrs[None, :, :]) ** 2, axis=-1)     # (n, n_ctrs)
        _, idx = lax.top_k(-d2, k)                                         # (n, k)
        sel_w = wts[idx]                                                   # (n, k, d_in, d_out)
        applied_w = sel_w.sum(axis=1)                                      # (n, d_in, d_out)
        applied_off = offsets[idx].sum(axis=1) - jnp.sum(sel_w * ctrs[idx][..., None], axis=(1, 2))
        y = jnp.einsum("nio,ni->no", applied_w, x) + applied_off
        return y, d2

    configs = [
        dict(n=300, d_in=5, d_out=3, n_ctrs=20, k=3),   # exercises center/feature/lane padding, 3 grid steps
        dict(n=100, d_in=3, d_out=2, n_ctrs=8, k=1),    # exercises k=1, no center padding
    ]
    for c, cfg in enumerate(configs):
        kx, kc, kw, ko, _ = jax.random.split(jax.random.fold_in(root_key, c), 5)
        n, d_in, d_out, n_ctrs, k = cfg["n"], cfg["d_in"], cfg["d_out"], cfg["n_ctrs"], cfg["k"]
        x = jax.random.normal(kx, (n, d_in), dtype=jnp.float32)
        ctrs = jax.random.uniform(kc, (n_ctrs, d_in), dtype=jnp.float32)
        wts = jax.random.normal(kw, (n_ctrs, d_in, d_out), dtype=jnp.float32)
        offsets = jax.random.normal(ko, (n_ctrs, d_out), dtype=jnp.float32)

        y = jax.block_until_ready(pwlnn_forward(x, ctrs, wts, offsets, k=k))
        y_ref, d2 = reference(x, ctrs, wts, offsets, k)

        assert y.shape == (n, d_out)
        err = jnp.abs(y - y_ref)
        tol = 1e-4 + 1e-4 * jnp.abs(y_ref)
        row_ok = jnp.all(err <= tol, axis=1)
        # Rows whose k-th / (k+1)-th nearest distances are (near-)tied may legitimately select a
        # different-but-equidistant neighbor than lax.top_k; excuse only those rows.
        d2_sorted = jnp.sort(d2, axis=1)
        near_tie = (d2_sorted[:, k] - d2_sorted[:, k - 1]) < 1e-4
        assert float(jnp.mean(row_ok)) > 0.95, f"cfg {cfg}: too many mismatching rows"
        assert bool(jnp.all(row_ok | near_tie)), (
            f"cfg {cfg}: mismatch vs reference, max_err={float(jnp.max(err))}")

    print("KERNEL_OK")
</pallas_src>

<mosaic_0001>
module attributes {stable_mosaic.version = 11 : i64} {
  func.func @_pwlnn_kernel(%arg0: i32, %arg1: memref<8x128xf32, #tpu.memory_space<vmem>>, %arg2: memref<24x8xf32, #tpu.memory_space<vmem>>, %arg3: memref<24x24xf32, #tpu.memory_space<vmem>>, %arg4: memref<3x128xf32, #tpu.memory_space<vmem>>) attributes {dimension_semantics = [#tpu.dimension_semantics<parallel>], iteration_bounds = array<i64: 3>, scalar_prefetch = 0 : i64, scratch_operands = 0 : i64, tpu.core_type = #tpu.core_type<tc>, window_params = [{transform_indices = @transform_0, window_bounds = array<i64: 8, 128>}, {pipeline_mode = #tpu.pipeline_mode<synchronous>, transform_indices = @transform_1, window_bounds = array<i64: 24, 8>}, {pipeline_mode = #tpu.pipeline_mode<synchronous>, transform_indices = @transform_2, window_bounds = array<i64: 24, 24>}, {transform_indices = @transform_3, window_bounds = array<i64: 3, 128>}]} {
    %c0 = arith.constant 0 : index
    %c0_0 = arith.constant 0 : index
    %0 = vector.load %arg1[%c0, %c0_0] : memref<8x128xf32, #tpu.memory_space<vmem>>, vector<8x128xf32>
    %c0_1 = arith.constant 0 : index
    %c0_2 = arith.constant 0 : index
    %1 = vector.load %arg2[%c0_1, %c0_2] : memref<24x8xf32, #tpu.memory_space<vmem>>, vector<24x8xf32>
    %c0_3 = arith.constant 0 : index
    %c0_4 = arith.constant 0 : index
    %2 = vector.load %arg3[%c0_3, %c0_4] : memref<24x24xf32, #tpu.memory_space<vmem>>, vector<24x24xf32>
    %cst = arith.constant dense<0.000000e+00> : vector<24x128xf32>
    %3 = tpu.matmul %1, %0, %cst {dimension_numbers = #tpu.dot_dimension_numbers<[1], [0], [0], [1], [0, 0, 1, 1], [], []>, precision = #tpu.contract_precision<fp32>} : vector<24x8xf32>, vector<8x128xf32>, vector<24x128xf32> -> vector<24x128xf32>
    %4 = arith.mulf %0, %0 : vector<8x128xf32>
    %cst_5 = arith.constant dense<0.000000e+00> : vector<128xf32>
    %5 = vector.multi_reduction <add>, %4, %cst_5 [0] : vector<8x128xf32> to vector<128xf32>
    %6 = vector.shape_cast %5 : vector<128xf32> to vector<1x128xf32>
    %cst_6 = arith.constant 1.000000e+00 : f32
    %7 = vector.broadcast %cst_6 : f32 to vector<1x128xf32>
    %8 = arith.subf %6, %7 : vector<1x128xf32>
    %9 = vector.broadcast %8 : vector<1x128xf32> to vector<24x128xf32>
    %10 = arith.addf %3, %9 : vector<24x128xf32>
    %cst_7 = arith.constant 0.000000e+00 : f32
    %11 = vector.broadcast %cst_7 : f32 to vector<24x128xf32>
    %12 = arith.maximumf %10, %11 : vector<24x128xf32>
    %13 = tpu.bitcast %12 : vector<24x128xf32> -> vector<24x128xi32>
    %14 = tpu.iota {dimensions = array<i32: 0>} : vector<24x128xi32>
    %c-32_i32 = arith.constant -32 : i32
    %15 = vector.broadcast %c-32_i32 : i32 to vector<24x128xi32>
    %16 = arith.andi %13, %15 : vector<24x128xi32>
    %17 = arith.ori %16, %14 : vector<24x128xi32>
    %c20_i32 = arith.constant 20 : i32
    %18 = vector.broadcast %c20_i32 : i32 to vector<24x128xi32>
    %19 = arith.cmpi sge, %14, %18 : vector<24x128xi32>
    %c2147483647_i32 = arith.constant 2147483647 : i32
    %20 = vector.broadcast %c2147483647_i32 : i32 to vector<24x128xi32>
    %21 = arith.select %19, %20, %17 : vector<24x128xi1>, vector<24x128xi32>
    %cst_8 = arith.constant 0.000000e+00 : f32
    %22 = vector.broadcast %cst_8 : f32 to vector<24x128xf32>
    %cst_9 = arith.constant dense<2147483647> : vector<128xi32>
    %23 = vector.multi_reduction <minsi>, %21, %cst_9 [0] : vector<24x128xi32> to vector<128xi32>
    %24 = vector.shape_cast %23 : vector<128xi32> to vector<1x128xi32>
    %25 = vector.broadcast %24 : vector<1x128xi32> to vector<24x128xi32>
    %26 = arith.cmpi eq, %21, %25 : vector<24x128xi32>
    %27 = arith.extui %26 : vector<24x128xi1> to vector<24x128xi32>
    %28 = arith.sitofp %27 : vector<24x128xi32> to vector<24x128xf32>
    %29 = arith.addf %22, %28 : vector<24x128xf32>
    %c2147483647_i32_10 = arith.constant 2147483647 : i32
    %30 = vector.broadcast %c2147483647_i32_10 : i32 to vector<24x128xi32>
    %31 = arith.select %26, %30, %21 : vector<24x128xi1>, vector<24x128xi32>
    %cst_11 = arith.constant dense<2147483647> : vector<128xi32>
    %32 = vector.multi_reduction <minsi>, %31, %cst_11 [0] : vector<24x128xi32> to vector<128xi32>
    %33 = vector.shape_cast %32 : vector<128xi32> to vector<1x128xi32>
    %34 = vector.broadcast %33 : vector<1x128xi32> to vector<24x128xi32>
    %35 = arith.cmpi eq, %31, %34 : vector<24x128xi32>
    %36 = arith.extui %35 : vector<24x128xi1> to vector<24x128xi32>
    %37 = arith.sitofp %36 : vector<24x128xi32> to vector<24x128xf32>
    %38 = arith.addf %29, %37 : vector<24x128xf32>
    %c2147483647_i32_12 = arith.constant 2147483647 : i32
    %39 = vector.broadcast %c2147483647_i32_12 : i32 to vector<24x128xi32>
    %40 = arith.select %35, %39, %31 : vector<24x128xi1>, vector<24x128xi32>
    %cst_13 = arith.constant dense<2147483647> : vector<128xi32>
    %41 = vector.multi_reduction <minsi>, %40, %cst_13 [0] : vector<24x128xi32> to vector<128xi32>
    %42 = vector.shape_cast %41 : vector<128xi32> to vector<1x128xi32>
    %43 = vector.broadcast %42 : vector<1x128xi32> to vector<24x128xi32>
    %44 = arith.cmpi eq, %40, %43 : vector<24x128xi32>
    %45 = arith.extui %44 : vector<24x128xi1> to vector<24x128xi32>
    %46 = arith.sitofp %45 : vector<24x128xi32> to vector<24x128xf32>
    %47 = arith.addf %38, %46 : vector<24x128xf32>
    %cst_14 = arith.constant dense<0.000000e+00> : vector<24x128xf32>
    %48 = tpu.matmul %2, %47, %cst_14 {dimension_numbers = #tpu.dot_dimension_numbers<[1], [0], [0], [1], [0, 0, 1, 1], [], []>, precision = #tpu.contract_precision<fp32>} : vector<24x24xf32>, vector<24x128xf32>, vector<24x128xf32> -> vector<24x128xf32>
    %49 = vector.shape_cast %48 : vector<24x128xf32> to vector<3x8x128xf32>
    %50 = vector.shape_cast %0 : vector<8x128xf32> to vector<1x8x128xf32>
    %51 = vector.broadcast %50 : vector<1x8x128xf32> to vector<3x8x128xf32>
    %52 = arith.mulf %49, %51 : vector<3x8x128xf32>
    %cst_15 = arith.constant dense<0.000000e+00> : vector<3x128xf32>
    %53 = vector.multi_reduction <add>, %52, %cst_15 [1] : vector<3x8x128xf32> to vector<3x128xf32>
    %c0_16 = arith.constant 0 : index
    %c0_17 = arith.constant 0 : index
    %54 = vector.load %arg4[%c0_16, %c0_17] : memref<3x128xf32, #tpu.memory_space<vmem>>, vector<3x128xf32>
    tpu.vector_store %arg4[%c0_16, %c0_17], %53 {strides = array<i32>} : memref<3x128xf32, #tpu.memory_space<vmem>>, vector<3x128xf32>,
    return
  }
  func.func @transform_0(%arg0: i32) -> (i32, i32) {
    %c0_i32 = arith.constant 0 : i32
    %c0_i32_0 = arith.constant 0 : i32
    return %c0_i32, %arg0 : i32, i32
  }
  func.func @transform_1(%arg0: i32) -> (i32, i32) {
    %c0_i32 = arith.constant 0 : i32
    %c0_i32_0 = arith.constant 0 : i32
    %c0_i32_1 = arith.constant 0 : i32
    return %c0_i32, %c0_i32_0 : i32, i32
  }
  func.func @transform_2(%arg0: i32) -> (i32, i32) {
    %c0_i32 = arith.constant 0 : i32
    %c0_i32_0 = arith.constant 0 : i32
    %c0_i32_1 = arith.constant 0 : i32
    return %c0_i32, %c0_i32_0 : i32, i32
  }
  func.func @transform_3(%arg0: i32) -> (i32, i32) {
    %c0_i32 = arith.constant 0 : i32
    %c0_i32_0 = arith.constant 0 : i32
    return %c0_i32, %arg0 : i32, i32
  }
}

</mosaic_0001>

<llo_original>
// kernel: tpu_custom_call.1
$region0: #{tpu_custom_call.1}
  #allocation0 [shape = 'u32[]', space=smem, size = 0x4, offset = 0x4, fixed_abs, tag = 'smem constant byte address 0x4 - core index']
  #allocation1 [shape = 'u32[144,128]{1,0:T(1,128)}', space=vmem, size = 0x12000, scoped, tag = 'internal scratch']
  %s0 = inlined_call_operand.vmem [shape: f32[8,384], index: 0, kind: input, shape index: {}]
  %s1 = inlined_call_operand.vmem [shape: f32[24,8], index: 1, kind: input, shape index: {}]
  %s2 = inlined_call_operand.hbm [shape: f32[24,24], index: 2, kind: input, shape index: {}]
  %s3 = inlined_call_operand.hbm [shape: f32[3,384], index: 3, kind: output, shape index: {}]
  %s4 = sld [smem:[#allocation0]]
  $region49: #{tpu_custom_call.1} parent=0
    _
  %s6 = ssub.s32 1, %s4
  %s7 = scalar_select 0, %s6, %s4
  $region1: #{tpu_custom_call.1} parent=0
    #allocation2 [shape = 'u8[12288]{0}', space=vmem, size = 0x3000, scoped, tag = 'input window, operand 2, single buffered']
    #allocation3 [shape = 's32[2]{0}', space=sflag, size = 0x8, scoped, tag = 'scoped memory for tpu_custom_call.1']
    #allocation4 [shape = 's32[2]{0}', space=sflag, size = 0x8, scoped, tag = 'scoped memory for tpu_custom_call.1']
    #allocation5 [shape = 'u8[4096]{0}', space=vmem, size = 0x1000, scoped, tag = 'output window, operand 0']
    %8 = vsyncpa [#allocation3], 0
    %9 = vsyncpa [#allocation4], 0
    %s10 = scalar_lea.sflag [#allocation4], 1
    %11 = vsyncpa %s10, 0
    loop: start=0, step=1, limit=5
    $region2: #{tpu_custom_call.1} parent=1 // loop_pre_header
      _
    $region3: #{tpu_custom_call.1} parent=1 // loop_header
      %s13 = sphi 0, %s17
      %p14 = scmp.ge.s32.totalorder %s13, 5
      %s23 = sphi 0, %s25
      %s26 = sphi 0, %s23
      %s27 = sphi 0, %s26
      %s43 = sphi 0, %s27
      %s47 = sphi 0, %s47
      %s49 = sphi 0, %s47
      %s50 = sphi 0, %s49
      %s64 = sphi 0, %s50
      %s68 = sphi 0, %s68
      %s70 = sphi 0, %s68
      %s71 = sphi 0, %s70
      %s85 = sphi 0, %s71
      %s91 = sphi 0, %s93
      %s94 = sphi 0, %s91
      %s95 = sphi 0, %s94
      %s111 = sphi 0, %s95
    $region4: #{tpu_custom_call.1} parent=1 // loop_header_branch
      %16 = sbr.rel (%p14) target = $region8
    $region5: #{tpu_custom_call.1} parent=1 // loop_body
      %s18 = ssub.s32 %s13, 1
      %s19 = ssub.s32 %s13, 2
      %s20 = sadd.s32 %s13, 1
      %s21 = ssub.s32 %s13, %s20
      %p22 = scmp.eq.s32.totalorder %s21, 0
      %s24 = sadd.s32 %s23, 1
      %s25 = scalar_select %p22, %s23, %s24
      %p28 = pneg %p22
      %p29 = scmp.eq.s32.totalorder %s13, 2
      %p30 = por %p28, %p29
      %p31 = scmp.ne.s32.totalorder %s23, %s26
      %p32 = scmp.eq.s32.totalorder %s13, 0
      %p33 = por %p31, %p32
      %p34 = scmp.ne.s32.totalorder %s23, %s26
      %p35 = scmp.eq.s32.totalorder %s18, 2
      %p36 = por %p34, %p35
      %p37 = scmp.ne.s32.totalorder %s26, %s27
      %p38 = scmp.eq.s32.totalorder %s18, 0
      %p39 = por %p37, %p38
      %p40 = scmp.ne.s32.totalorder %s26, %s27
      %p41 = scmp.eq.s32.totalorder %s19, 2
      %p42 = por %p40, %p41
      %p44 = scmp.ne.s32.totalorder %s27, %s43
      %p45 = scmp.eq.s32.totalorder %s19, 0
      %p46 = por %p44, %p45
      %s48 = sadd.s32 %s47, 1
      %p51 = scmp.eq.s32.totalorder %s13, 2
      %p52 = scmp.ne.s32.totalorder %s47, %s49
      %p53 = scmp.eq.s32.totalorder %s13, 0
      %p54 = por %p52, %p53
      %p55 = scmp.ne.s32.totalorder %s47, %s49
      %p56 = scmp.eq.s32.totalorder %s18, 2
      %p57 = por %p55, %p56
      %p58 = scmp.ne.s32.totalorder %s49, %s50
      %p59 = scmp.eq.s32.totalorder %s18, 0
      %p60 = por %p58, %p59
      %p61 = scmp.ne.s32.totalorder %s49, %s50
      %p62 = scmp.eq.s32.totalorder %s19, 2
      %p63 = por %p61, %p62
      %p65 = scmp.ne.s32.totalorder %s50, %s64
      %p66 = scmp.eq.s32.totalorder %s19, 0
      %p67 = por %p65, %p66
      %s69 = sadd.s32 %s68, 1
      %p72 = scmp.eq.s32.totalorder %s13, 2
      %p73 = scmp.ne.s32.totalorder %s68, %s70
      %p74 = scmp.eq.s32.totalorder %s13, 0
      %p75 = por %p73, %p74
      %p76 = scmp.ne.s32.totalorder %s68, %s70
      %p77 = scmp.eq.s32.totalorder %s18, 2
      %p78 = por %p76, %p77
      %p79 = scmp.ne.s32.totalorder %s70, %s71
      %p80 = scmp.eq.s32.totalorder %s18, 0
      %p81 = por %p79, %p80
      %p82 = scmp.ne.s32.totalorder %s70, %s71
      %p83 = scmp.eq.s32.totalorder %s19, 2
      %p84 = por %p82, %p83
      %p86 = scmp.ne.s32.totalorder %s71, %s85
      %p87 = scmp.eq.s32.totalorder %s19, 0
      %p88 = por %p86, %p87
      %s89 = ssub.s32 %s13, %s20
      %p90 = scmp.eq.s32.totalorder %s89, 0
      %s92 = sadd.s32 %s91, 1
      %s93 = scalar_select %p90, %s91, %s92
      %p96 = pneg %p90
      %p97 = scmp.eq.s32.totalorder %s13, 2
      %p98 = por %p96, %p97
      %p99 = scmp.ne.s32.totalorder %s91, %s94
      %p100 = scmp.eq.s32.totalorder %s13, 0
      %p101 = por %p99, %p100
      %p102 = scmp.ne.s32.totalorder %s91, %s94
      %p103 = scmp.eq.s32.totalorder %s18, 2
      %p104 = por %p102, %p103
      %p105 = scmp.ne.s32.totalorder %s94, %s95
      %p106 = scmp.eq.s32.totalorder %s18, 0
      %p107 = por %p105, %p106
      %p108 = scmp.ne.s32.totalorder %s94, %s95
      %p109 = scmp.eq.s32.totalorder %s19, 2
      %p110 = por %p108, %p109
      %p112 = scmp.ne.s32.totalorder %s95, %s111
      %p113 = scmp.eq.s32.totalorder %s19, 0
      %p114 = por %p112, %p113
      %p115 = scmp.le.s32.totalorder 1, %s13
      %p116 = scmp.lt.s32.totalorder %s13, 4
      %p117 = pnand %p115, %p116
      %p118 = pneg %p117
      // Predicated region
      $region9: #{tpu_custom_call.1} parent=5 // pred_check
        _
      $region10: #{tpu_custom_call.1} parent=5 // pred_check_branch
        %120 = sbr.rel (%p117) target = $region12
      $region11: #{tpu_custom_call.1} parent=5 // pred_region
        %s121 = ssub.s32 %s13, 1
        // Predicated region
        $region13: #{tpu_custom_call.1} parent=11 // pred_check
          %p122 = pneg %p60
        $region14: #{tpu_custom_call.1} parent=11 // pred_check_branch
          %124 = sbr.rel (%p122) target = $region16
        $region15: #{tpu_custom_call.1} parent=11 // pred_region
          _
        $region16: #{tpu_custom_call.1} parent=11 // pred_fallthru
          _
        // Predicated region
        $region17: #{tpu_custom_call.1} parent=11 // pred_check
          %p125 = pneg %p81
        $region18: #{tpu_custom_call.1} parent=11 // pred_check_branch
          %127 = sbr.rel (%p125) target = $region20
        $region19: #{tpu_custom_call.1} parent=11 // pred_region
          %s129 = ssub.s32 384, 384
          %130 = vsyncadd [#allocation3], %s129
          %s131 = sshll.u32 [#allocation2], 4
          %s132 = int_to_ptr.vmem [resolvable:$true] %s131
          %137 = dma.hbm_to_vmem [thread:$0]  %s2, 384, %s132, [#allocation3], 128, 128, 8
        $region20: #{tpu_custom_call.1} parent=11 // pred_fallthru
          _
      $region12: #{tpu_custom_call.1} parent=5 // pred_fallthru
        _
      %p138 = scmp.lt.s32.totalorder %s13, 3
      // Predicated region
      $region21: #{tpu_custom_call.1} parent=5 // pred_check
        %p139 = pneg %p138
      $region22: #{tpu_custom_call.1} parent=5 // pred_check_branch
        %141 = sbr.rel (%p139) target = $region24
      $region23: #{tpu_custom_call.1} parent=5 // pred_region
        // Predicated region
        $region25: #{tpu_custom_call.1} parent=23 // pred_check
          %p142 = pneg %p33
        $region26: #{tpu_custom_call.1} parent=23 // pred_check_branch
          %144 = sbr.rel (%p142) target = $region28
        $region27: #{tpu_custom_call.1} parent=23 // pred_region
          %p145 = scmp.lt.s32.totalorder %s13, 2
          %s146 = scalar_select %p145, %s13, 2
          %s147 = smul.addr %s146, 8
          %s148 = scalar_lea.vmem %s0, %s147
        $region28: #{tpu_custom_call.1} parent=23 // pred_fallthru
          _
      $region24: #{tpu_custom_call.1} parent=5 // pred_fallthru
        _
      %p149 = scmp.le.s32.totalorder 1, %s13
      %p150 = scmp.lt.s32.totalorder %s13, 4
      %p151 = pnand %p149, %p150
      %p152 = pneg %p151
      // Predicated region
      $region29: #{tpu_custom_call.1} parent=5 // pred_check
        _
      $region30: #{tpu_custom_call.1} parent=5 // pred_check_branch
        %154 = sbr.rel (%p151) target = $region32
      $region31: #{tpu_custom_call.1} parent=5 // pred_region
        %s155 = ssub.s32 %s13, 1
        // Predicated region
        $region33: #{tpu_custom_call.1} parent=31 // pred_check
          %p156 = pneg %p81
        $region34: #{tpu_custom_call.1} parent=31 // pred_check_branch
          %158 = sbr.rel (%p156) target = $region36
        $region35: #{tpu_custom_call.1} parent=31 // pred_region
          %159 = dma.done [#allocation3], 384
        $region36: #{tpu_custom_call.1} parent=31 // pred_fallthru
          _
        %p160 = scmp.lt.s32.totalorder %s18, 2
        %s161 = scalar_select %p160, %s18, 2
        %s162 = smul.addr %s161, 8
        %s163 = scalar_lea.vmem %s0, %s162
        %p164 = pneg %p39
        %p165 = pneg %p36
        %p166 = pneg %p60
        %p167 = pneg %p57
        %p168 = pneg %p81
        %p169 = pneg %p78
        %p170 = pneg %p107
        %p171 = pneg %p104
        %s172 = sand.u32 %s94, 1
        %s173 = scalar_lea.sflag [#allocation4], %s172
        %s174 = sand.u32 %s94, 1
        %s175 = smul.addr %s174, 4
        %s176 = scalar_lea.vmem [#allocation5], %s175
        %p177 = scmp.lt.s32.totalorder %s18, 2
        %s178 = scalar_select %p177, %s18, 2
        %s179 = smul.addr %s178, 8
        %s180 = scalar_lea.vmem %s0, %s179
        %v181 = vld [vmem:[%s180] sm:$0xff]
        %v182 = vld [vmem:[%s1] sm:$0xff]
        %v183 = vld [vmem:[%s1 + $0x8] sm:$0xff]
        %v184 = vld [vmem:[%s1 + $0x10] sm:$0xff]
        %v185 = vld [vmem:[#allocation2] sm:$0xff]
        %v186 = vld [vmem:[#allocation2 + $0x8] sm:$0xff]
        %v187 = vld [vmem:[#allocation2 + $0x10] sm:$0xff]
        %v188 = vmul.f32 %v181, %v181
        %v189 = vrot.slane %v188, 4
        %v190 = vadd.f32 %v188, %v189
        %v191 = vrot.slane %v190, 2
        %v192 = vadd.f32 %v190, %v191
        %v193 = vrot.slane %v192, 1
        %v194 = vadd.f32 %v192, %v193
        %v195 = vsub.f32 %v194, 1.0
        %vm196 = vcmask 64512
        %v198 = vsel %vm196, %v182, 0
        %v201 = vsel %vm196, %v183, 0
        %v204 = vsel %vm196, %v184, 0
        %206 = vmatprep.subr.mxu0 0.0
        %207 = vmatpush1.msra.mxu0 0.0
        %208 = vmatprep.subr.mxu0 0.0
        %209 = vmatpush1.msra.mxu0 0.0
        %210 = vmatprep.subr.mxu0 0.0
        %211 = vmatpush1.msra.mxu0 0.0
        %212 = vmatprep.subr.mxu0 0.0
        %213 = vmatpush1.msra.mxu0 0.0
        %214 = vmatprep.subr.mxu0 0.0
        %215 = vmatpush1.msra.mxu0 0.0
        %216 = vmatprep.subr.mxu0 0.0
        %217 = vmatpush1.msra.mxu0 0.0
        %218 = vmatprep.subr.mxu0 0.0
        %219 = vmatpush1.msra.mxu0 0.0
        %220 = vmatprep.subr.mxu0 0.0
        %221 = vmatpush1.msra.mxu0 0.0
        %222 = vmatprep.subr.mxu0 0.0
        %223 = vmatpush1.msra.mxu0 0.0
        %224 = vmatprep.subr.mxu0 0.0
        %225 = vmatpush1.msra.mxu0 0.0
        %226 = vmatprep.subr.mxu0 0.0
        %227 = vmatpush1.msra.mxu0 0.0
        %228 = vmatprep.subr.mxu0 0.0
        %229 = vmatpush1.msra.mxu0 0.0
        %230 = vmatprep.subr.mxu0 0.0
        %231 = vmatpush1.msra.mxu0 0.0
        %232 = vmatprep.subr.mxu0 0.0
        %233 = vmatpush1.msra.mxu0 0.0
        %234 = vmatprep.subr.mxu0 0.0
        %235 = vmatpush1.msra.mxu0 0.0
        %236 = vmatprep.subr.mxu0 0.0
        %v237 = vand.u32 %v181, 4294901760
        %238 = vmatpush1.msra.mxu0 %v237
        %239 = vmatprep.subr.mxu0 0.0
        %240 = vmatpush2.msra.mxu0 0.0
        %241 = vmatprep.subr.mxu0 0.0
        %242 = vmatpush2.msra.mxu0 0.0
        %243 = vmatprep.subr.mxu0 0.0
        %244 = vmatpush2.msra.mxu0 0.0
        %245 = vmatprep.subr.mxu0 0.0
        %246 = vmatpush2.msra.mxu0 0.0
        %247 = vmatprep.subr.mxu0 0.0
        %248 = vmatpush2.msra.mxu0 0.0
        %249 = vmatprep.subr.mxu0 0.0
        %250 = vmatpush2.msra.mxu0 0.0
        %251 = vmatprep.subr.mxu0 0.0
        %252 = vmatpush2.msra.mxu0 0.0
        %253 = vmatprep.subr.mxu0 0.0
        %254 = vmatpush2.msra.mxu0 0.0
        %255 = vmatprep.subr.mxu0 0.0
        %256 = vmatpush2.msra.mxu0 0.0
        %257 = vmatprep.subr.mxu0 0.0
        %258 = vmatpush2.msra.mxu0 0.0
        %259 = vmatprep.subr.mxu0 0.0
        %260 = vmatpush2.msra.mxu0 0.0
        %261 = vmatprep.subr.mxu0 0.0
        %262 = vmatpush2.msra.mxu0 0.0
        %263 = vmatprep.subr.mxu0 0.0
        %264 = vmatpush2.msra.mxu0 0.0
        %265 = vmatprep.subr.mxu0 0.0
        %266 = vmatpush2.msra.mxu0 0.0
        %267 = vmatprep.subr.mxu0 0.0
        %268 = vmatpush2.msra.mxu0 0.0
        %269 = vmatprep.subr.mxu0 0.0
        %270 = vmatpush2.msra.mxu0 0.0
        %271 = vmatprep.mubr.f32.mxu0 0.0
        %v272 = vand.u32 %v198, 4294901760
        %v273 = vsub.f32 %v198, %v272
        %v274 = vand.u32 %v273, 4294901760
        %v275 = vsub.f32 %v273, %v274
        %v276 = vand.u32 %v275, 4294901760
        %277 = vmatmul.mubr.f32.gmra.mxu0 %v276
        %v278 = vpop.f32.mrf.mxu0
        %v279 = vadd.f32 %v195, %v278
        %v280 = vpop.f32.mrf.mxu0
        %281 = vmatprep.mubr.f32.mxu0 0.0
        %v282 = vand.u32 %v201, 4294901760
        %v283 = vsub.f32 %v201, %v282
        %v284 = vand.u32 %v283, 4294901760
        %v285 = vsub.f32 %v283, %v284
        %v286 = vand.u32 %v285, 4294901760
        %287 = vmatmul.mubr.f32.gmra.mxu0 %v286
        %v288 = vpop.f32.mrf.mxu0
        %v289 = vadd.f32 %v195, %v288
        %v290 = vpop.f32.mrf.mxu0
        %291 = vmatprep.mubr.f32.mxu0 0.0
        %v292 = vand.u32 %v204, 4294901760
        %v293 = vsub.f32 %v204, %v292
        %v294 = vand.u32 %v293, 4294901760
        %v295 = vsub.f32 %v293, %v294
        %v296 = vand.u32 %v295, 4294901760
        %297 = vmatmul.mubr.f32.gmra.mxu0 %v296
        %v298 = vpop.f32.mrf.mxu0
        %v299 = vadd.f32 %v195, %v298
        %v300 = vpop.f32.mrf.mxu0
        %301 = vdwg.mxu0
        %302 = vmatprep.subr.mxu0 0.0
        %303 = vmatpush1.msra.mxu0 0.0
        %304 = vmatprep.subr.mxu0 0.0
        %305 = vmatpush1.msra.mxu0 0.0
        %306 = vmatprep.subr.mxu0 0.0
        %307 = vmatpush1.msra.mxu0 0.0
        %308 = vmatprep.subr.mxu0 0.0
        %309 = vmatpush1.msra.mxu0 0.0
        %310 = vmatprep.subr.mxu0 0.0
        %311 = vmatpush1.msra.mxu0 0.0
        %312 = vmatprep.subr.mxu0 0.0
        %313 = vmatpush1.msra.mxu0 0.0
        %314 = vmatprep.subr.mxu0 0.0
        %315 = vmatpush1.msra.mxu0 0.0
        %316 = vmatprep.subr.mxu0 0.0
        %317 = vmatpush1.msra.mxu0 0.0
        %318 = vmatprep.subr.mxu0 0.0
        %319 = vmatpush1.msra.mxu0 0.0
        %320 = vmatprep.subr.mxu0 0.0
        %321 = vmatpush1.msra.mxu0 0.0
        %322 = vmatprep.subr.mxu0 0.0
        %323 = vmatpush1.msra.mxu0 0.0
        %324 = vmatprep.subr.mxu0 0.0
        %325 = vmatpush1.msra.mxu0 0.0
        %326 = vmatprep.subr.mxu0 0.0
        %327 = vmatpush1.msra.mxu0 0.0
        %328 = vmatprep.subr.mxu0 0.0
        %329 = vmatpush1.msra.mxu0 0.0
        %330 = vmatprep.subr.mxu0 0.0
        %331 = vmatpush1.msra.mxu0 0.0
        %332 = vmatprep.subr.mxu0 0.0
        %v333 = vand.u32 %v181, 4294901760
        %v334 = vsub.f32 %v181, %v333
        %v335 = vand.u32 %v334, 4294901760
        %v336 = vsub.f32 %v334, %v335
        %v337 = vand.u32 %v336, 4294901760
        %338 = vmatpush1.msra.mxu0 %v337
        %339 = vmatprep.subr.mxu0 0.0
        %340 = vmatpush2.msra.mxu0 0.0
        %341 = vmatprep.subr.mxu0 0.0
        %342 = vmatpush2.msra.mxu0 0.0
        %343 = vmatprep.subr.mxu0 0.0
        %344 = vmatpush2.msra.mxu0 0.0
        %345 = vmatprep.subr.mxu0 0.0
        %346 = vmatpush2.msra.mxu0 0.0
        %347 = vmatprep.subr.mxu0 0.0
        %348 = vmatpush2.msra.mxu0 0.0
        %349 = vmatprep.subr.mxu0 0.0
        %350 = vmatpush2.msra.mxu0 0.0
        %351 = vmatprep.subr.mxu0 0.0
        %352 = vmatpush2.msra.mxu0 0.0
        %353 = vmatprep.subr.mxu0 0.0
        %354 = vmatpush2.msra.mxu0 0.0
        %355 = vmatprep.subr.mxu0 0.0
        %356 = vmatpush2.msra.mxu0 0.0
        %357 = vmatprep.subr.mxu0 0.0
        %358 = vmatpush2.msra.mxu0 0.0
        %359 = vmatprep.subr.mxu0 0.0
        %360 = vmatpush2.msra.mxu0 0.0
        %361 = vmatprep.subr.mxu0 0.0
        %362 = vmatpush2.msra.mxu0 0.0
        %363 = vmatprep.subr.mxu0 0.0
        %364 = vmatpush2.msra.mxu0 0.0
        %365 = vmatprep.subr.mxu0 0.0
        %366 = vmatpush2.msra.mxu0 0.0
        %367 = vmatprep.subr.mxu0 0.0
        %368 = vmatpush2.msra.mxu0 0.0
        %369 = vmatprep.subr.mxu0 0.0
        %370 = vmatpush2.msra.mxu0 0.0
        %371 = vmatprep.mubr.f32.mxu0 0.0
        %v372 = vand.u32 %v198, 4294901760
        %373 = vmatmul.mubr.f32.gmra.mxu0 %v372
        %v374 = vpop.f32.mrf.mxu0
        %v375 = vadd.f32 %v279, %v374
        %v376 = vpop.f32.mrf.mxu0
        %377 = vmatprep.mubr.f32.mxu0 0.0
        %v378 = vand.u32 %v201, 4294901760
        %379 = vmatmul.mubr.f32.gmra.mxu0 %v378
        %v380 = vpop.f32.mrf.mxu0
        %v381 = vadd.f32 %v289, %v380
        %v382 = vpop.f32.mrf.mxu0
        %383 = vmatprep.mubr.f32.mxu0 0.0
        %v384 = vand.u32 %v204, 4294901760
        %385 = vmatmul.mubr.f32.gmra.mxu0 %v384
        %v386 = vpop.f32.mrf.mxu0
        %v387 = vadd.f32 %v299, %v386
        %v388 = vpop.f32.mrf.mxu0
        %389 = vdwg.mxu0
        %390 = vmatprep.subr.mxu0 0.0
        %391 = vmatpush1.msra.mxu0 0.0
        %392 = vmatprep.subr.mxu0 0.0
        %393 = vmatpush1.msra.mxu0 0.0
        %394 = vmatprep.subr.mxu0 0.0
        %395 = vmatpush1.msra.mxu0 0.0
        %396 = vmatprep.subr.mxu0 0.0
        %397 = vmatpush1.msra.mxu0 0.0
        %398 = vmatprep.subr.mxu0 0.0
        %399 = vmatpush1.msra.mxu0 0.0
        %400 = vmatprep.subr.mxu0 0.0
        %401 = vmatpush1.msra.mxu0 0.0
        %402 = vmatprep.subr.mxu0 0.0
        %403 = vmatpush1.msra.mxu0 0.0
        %404 = vmatprep.subr.mxu0 0.0
        %405 = vmatpush1.msra.mxu0 0.0
        %406 = vmatprep.subr.mxu0 0.0
        %407 = vmatpush1.msra.mxu0 0.0
        %408 = vmatprep.subr.mxu0 0.0
        %409 = vmatpush1.msra.mxu0 0.0
        %410 = vmatprep.subr.mxu0 0.0
        %411 = vmatpush1.msra.mxu0 0.0
        %412 = vmatprep.subr.mxu0 0.0
        %413 = vmatpush1.msra.mxu0 0.0
        %414 = vmatprep.subr.mxu0 0.0
        %415 = vmatpush1.msra.mxu0 0.0
        %416 = vmatprep.subr.mxu0 0.0
        %417 = vmatpush1.msra.mxu0 0.0
        %418 = vmatprep.subr.mxu0 0.0
        %419 = vmatpush1.msra.mxu0 0.0
        %420 = vmatprep.subr.mxu0 0.0
        %v421 = vand.u32 %v181, 4294901760
        %v422 = vsub.f32 %v181, %v421
        %423 = vmatpush1.msra.mxu0 %v422
        %424 = vmatprep.subr.mxu0 0.0
        %425 = vmatpush2.msra.mxu0 0.0
        %426 = vmatprep.subr.mxu0 0.0
        %427 = vmatpush2.msra.mxu0 0.0
        %428 = vmatprep.subr.mxu0 0.0
        %429 = vmatpush2.msra.mxu0 0.0
        %430 = vmatprep.subr.mxu0 0.0
        %431 = vmatpush2.msra.mxu0 0.0
        %432 = vmatprep.subr.mxu0 0.0
        %433 = vmatpush2.msra.mxu0 0.0
        %434 = vmatprep.subr.mxu0 0.0
        %435 = vmatpush2.msra.mxu0 0.0
        %436 = vmatprep.subr.mxu0 0.0
        %437 = vmatpush2.msra.mxu0 0.0
        %438 = vmatprep.subr.mxu0 0.0
        %439 = vmatpush2.msra.mxu0 0.0
        %440 = vmatprep.subr.mxu0 0.0
        %441 = vmatpush2.msra.mxu0 0.0
        %442 = vmatprep.subr.mxu0 0.0
        %443 = vmatpush2.msra.mxu0 0.0
        %444 = vmatprep.subr.mxu0 0.0
        %445 = vmatpush2.msra.mxu0 0.0
        %446 = vmatprep.subr.mxu0 0.0
        %447 = vmatpush2.msra.mxu0 0.0
        %448 = vmatprep.subr.mxu0 0.0
        %449 = vmatpush2.msra.mxu0 0.0
        %450 = vmatprep.subr.mxu0 0.0
        %451 = vmatpush2.msra.mxu0 0.0
        %452 = vmatprep.subr.mxu0 0.0
        %453 = vmatpush2.msra.mxu0 0.0
        %454 = vmatprep.subr.mxu0 0.0
        %455 = vmatpush2.msra.mxu0 0.0
        %456 = vmatprep.mubr.f32.mxu0 0.0
        %v457 = vand.u32 %v198, 4294901760
        %v458 = vsub.f32 %v198, %v457
        %459 = vmatmul.mubr.f32.gmra.mxu0 %v458
        %v460 = vpop.f32.mrf.mxu0
        %v461 = vadd.f32 %v375, %v460
        %v462 = vpop.f32.mrf.mxu0
        %463 = vmatprep.mubr.f32.mxu0 0.0
        %v464 = vand.u32 %v201, 4294901760
        %v465 = vsub.f32 %v201, %v464
        %466 = vmatmul.mubr.f32.gmra.mxu0 %v465
        %v467 = vpop.f32.mrf.mxu0
        %v468 = vadd.f32 %v381, %v467
        %v469 = vpop.f32.mrf.mxu0
        %470 = vmatprep.mubr.f32.mxu0 0.0
        %v471 = vand.u32 %v204, 4294901760
        %v472 = vsub.f32 %v204, %v471
        %473 = vmatmul.mubr.f32.gmra.mxu0 %v472
        %v474 = vpop.f32.mrf.mxu0
        %v475 = vadd.f32 %v387, %v474
        %v476 = vpop.f32.mrf.mxu0
        %477 = vdwg.mxu0
        %478 = vmatprep.subr.mxu0 0.0
        %479 = vmatpush1.msra.mxu0 0.0
        %480 = vmatprep.subr.mxu0 0.0
        %481 = vmatpush1.msra.mxu0 0.0
        %482 = vmatprep.subr.mxu0 0.0
        %483 = vmatpush1.msra.mxu0 0.0
        %484 = vmatprep.subr.mxu0 0.0
        %485 = vmatpush1.msra.mxu0 0.0
        %486 = vmatprep.subr.mxu0 0.0
        %487 = vmatpush1.msra.mxu0 0.0
        %488 = vmatprep.subr.mxu0 0.0
        %489 = vmatpush1.msra.mxu0 0.0
        %490 = vmatprep.subr.mxu0 0.0
        %491 = vmatpush1.msra.mxu0 0.0
        %492 = vmatprep.subr.mxu0 0.0
        %493 = vmatpush1.msra.mxu0 0.0
        %494 = vmatprep.subr.mxu0 0.0
        %495 = vmatpush1.msra.mxu0 0.0
        %496 = vmatprep.subr.mxu0 0.0
        %497 = vmatpush1.msra.mxu0 0.0
        %498 = vmatprep.subr.mxu0 0.0
        %499 = vmatpush1.msra.mxu0 0.0
        %500 = vmatprep.subr.mxu0 0.0
        %501 = vmatpush1.msra.mxu0 0.0
        %502 = vmatprep.subr.mxu0 0.0
        %503 = vmatpush1.msra.mxu0 0.0
        %504 = vmatprep.subr.mxu0 0.0
        %505 = vmatpush1.msra.mxu0 0.0
        %506 = vmatprep.subr.mxu0 0.0
        %507 = vmatpush1.msra.mxu0 0.0
        %508 = vmatprep.subr.mxu0 0.0
        %v509 = vand.u32 %v181, 4294901760
        %510 = vmatpush1.msra.mxu0 %v509
        %511 = vmatprep.subr.mxu0 0.0
        %512 = vmatpush2.msra.mxu0 0.0
        %513 = vmatprep.subr.mxu0 0.0
        %514 = vmatpush2.msra.mxu0 0.0
        %515 = vmatprep.subr.mxu0 0.0
        %516 = vmatpush2.msra.mxu0 0.0
        %517 = vmatprep.subr.mxu0 0.0
        %518 = vmatpush2.msra.mxu0 0.0
        %519 = vmatprep.subr.mxu0 0.0
        %520 = vmatpush2.msra.mxu0 0.0
        %521 = vmatprep.subr.mxu0 0.0
        %522 = vmatpush2.msra.mxu0 0.0
        %523 = vmatprep.subr.mxu0 0.0
        %524 = vmatpush2.msra.mxu0 0.0
        %525 = vmatprep.subr.mxu0 0.0
        %526 = vmatpush2.msra.mxu0 0.0
        %527 = vmatprep.subr.mxu0 0.0
        %528 = vmatpush2.msra.mxu0 0.0
        %529 = vmatprep.subr.mxu0 0.0
        %530 = vmatpush2.msra.mxu0 0.0
        %531 = vmatprep.subr.mxu0 0.0
        %532 = vmatpush2.msra.mxu0 0.0
        %533 = vmatprep.subr.mxu0 0.0
        %534 = vmatpush2.msra.mxu0 0.0
        %535 = vmatprep.subr.mxu0 0.0
        %536 = vmatpush2.msra.mxu0 0.0
        %537 = vmatprep.subr.mxu0 0.0
        %538 = vmatpush2.msra.mxu0 0.0
        %539 = vmatprep.subr.mxu0 0.0
        %540 = vmatpush2.msra.mxu0 0.0
        %541 = vmatprep.subr.mxu0 0.0
        %542 = vmatpush2.msra.mxu0 0.0
        %543 = vmatprep.mubr.f32.mxu0 0.0
        %v544 = vand.u32 %v198, 4294901760
        %v545 = vsub.f32 %v198, %v544
        %v546 = vand.u32 %v545, 4294901760
        %547 = vmatmul.mubr.f32.gmra.mxu0 %v546
        %v548 = vpop.f32.mrf.mxu0
        %v549 = vadd.f32 %v461, %v548
        %v550 = vpop.f32.mrf.mxu0
        %551 = vmatprep.mubr.f32.mxu0 0.0
        %v552 = vand.u32 %v201, 4294901760
        %v553 = vsub.f32 %v201, %v552
        %v554 = vand.u32 %v553, 4294901760
        %555 = vmatmul.mubr.f32.gmra.mxu0 %v554
        %v556 = vpop.f32.mrf.mxu0
        %v557 = vadd.f32 %v468, %v556
        %v558 = vpop.f32.mrf.mxu0
        %559 = vmatprep.mubr.f32.mxu0 0.0
        %v560 = vand.u32 %v204, 4294901760
        %v561 = vsub.f32 %v204, %v560
        %v562 = vand.u32 %v561, 4294901760
        %563 = vmatmul.mubr.f32.gmra.mxu0 %v562
        %v564 = vpop.f32.mrf.mxu0
        %v565 = vadd.f32 %v475, %v564
        %v566 = vpop.f32.mrf.mxu0
        %567 = vdwg.mxu0
        %568 = vmatprep.subr.mxu0 0.0
        %569 = vmatpush1.msra.mxu0 0.0
        %570 = vmatprep.subr.mxu0 0.0
        %571 = vmatpush1.msra.mxu0 0.0
        %572 = vmatprep.subr.mxu0 0.0
        %573 = vmatpush1.msra.mxu0 0.0
        %574 = vmatprep.subr.mxu0 0.0
        %575 = vmatpush1.msra.mxu0 0.0
        %576 = vmatprep.subr.mxu0 0.0
        %577 = vmatpush1.msra.mxu0 0.0
        %578 = vmatprep.subr.mxu0 0.0
        %579 = vmatpush1.msra.mxu0 0.0
        %580 = vmatprep.subr.mxu0 0.0
        %581 = vmatpush1.msra.mxu0 0.0
        %582 = vmatprep.subr.mxu0 0.0
        %583 = vmatpush1.msra.mxu0 0.0
        %584 = vmatprep.subr.mxu0 0.0
        %585 = vmatpush1.msra.mxu0 0.0
        %586 = vmatprep.subr.mxu0 0.0
        %587 = vmatpush1.msra.mxu0 0.0
        %588 = vmatprep.subr.mxu0 0.0
        %589 = vmatpush1.msra.mxu0 0.0
        %590 = vmatprep.subr.mxu0 0.0
        %591 = vmatpush1.msra.mxu0 0.0
        %592 = vmatprep.subr.mxu0 0.0
        %593 = vmatpush1.msra.mxu0 0.0
        %594 = vmatprep.subr.mxu0 0.0
        %595 = vmatpush1.msra.mxu0 0.0
        %596 = vmatprep.subr.mxu0 0.0
        %597 = vmatpush1.msra.mxu0 0.0
        %598 = vmatprep.subr.mxu0 0.0
        %v599 = vand.u32 %v181, 4294901760
        %v600 = vsub.f32 %v181, %v599
        %v601 = vand.u32 %v600, 4294901760
        %602 = vmatpush1.msra.mxu0 %v601
        %603 = vmatprep.subr.mxu0 0.0
        %604 = vmatpush2.msra.mxu0 0.0
        %605 = vmatprep.subr.mxu0 0.0
        %606 = vmatpush2.msra.mxu0 0.0
        %607 = vmatprep.subr.mxu0 0.0
        %608 = vmatpush2.msra.mxu0 0.0
        %609 = vmatprep.subr.mxu0 0.0
        %610 = vmatpush2.msra.mxu0 0.0
        %611 = vmatprep.subr.mxu0 0.0
        %612 = vmatpush2.msra.mxu0 0.0
        %613 = vmatprep.subr.mxu0 0.0
        %614 = vmatpush2.msra.mxu0 0.0
        %615 = vmatprep.subr.mxu0 0.0
        %616 = vmatpush2.msra.mxu0 0.0
        %617 = vmatprep.subr.mxu0 0.0
        %618 = vmatpush2.msra.mxu0 0.0
        %619 = vmatprep.subr.mxu0 0.0
        %620 = vmatpush2.msra.mxu0 0.0
        %621 = vmatprep.subr.mxu0 0.0
        %622 = vmatpush2.msra.mxu0 0.0
        %623 = vmatprep.subr.mxu0 0.0
        %624 = vmatpush2.msra.mxu0 0.0
        %625 = vmatprep.subr.mxu0 0.0
        %626 = vmatpush2.msra.mxu0 0.0
        %627 = vmatprep.subr.mxu0 0.0
        %628 = vmatpush2.msra.mxu0 0.0
        %629 = vmatprep.subr.mxu0 0.0
        %630 = vmatpush2.msra.mxu0 0.0
        %631 = vmatprep.subr.mxu0 0.0
        %632 = vmatpush2.msra.mxu0 0.0
        %633 = vmatprep.subr.mxu0 0.0
        %634 = vmatpush2.msra.mxu0 0.0
        %635 = vmatprep.mubr.f32.mxu0 0.0
        %v636 = vand.u32 %v198, 4294901760
        %637 = vmatmul.mubr.f32.gmra.mxu0 %v636
        %v638 = vpop.f32.mrf.mxu0
        %v639 = vadd.f32 %v549, %v638
        %v640 = vpop.f32.mrf.mxu0
        %641 = vmatprep.mubr.f32.mxu0 0.0
        %v642 = vand.u32 %v201, 4294901760
        %643 = vmatmul.mubr.f32.gmra.mxu0 %v642
        %v644 = vpop.f32.mrf.mxu0
        %v645 = vadd.f32 %v557, %v644
        %v646 = vpop.f32.mrf.mxu0
        %647 = vmatprep.mubr.f32.mxu0 0.0
        %v648 = vand.u32 %v204, 4294901760
        %649 = vmatmul.mubr.f32.gmra.mxu0 %v648
        %v650 = vpop.f32.mrf.mxu0
        %v651 = vadd.f32 %v565, %v650
        %v652 = vpop.f32.mrf.mxu0
        %653 = vdwg.mxu0
        %654 = vmatprep.subr.mxu0 0.0
        %655 = vmatpush1.msra.mxu0 0.0
        %656 = vmatprep.subr.mxu0 0.0
        %657 = vmatpush1.msra.mxu0 0.0
        %658 = vmatprep.subr.mxu0 0.0
        %659 = vmatpush1.msra.mxu0 0.0
        %660 = vmatprep.subr.mxu0 0.0
        %661 = vmatpush1.msra.mxu0 0.0
        %662 = vmatprep.subr.mxu0 0.0
        %663 = vmatpush1.msra.mxu0 0.0
        %664 = vmatprep.subr.mxu0 0.0
        %665 = vmatpush1.msra.mxu0 0.0
        %666 = vmatprep.subr.mxu0 0.0
        %667 = vmatpush1.msra.mxu0 0.0
        %668 = vmatprep.subr.mxu0 0.0
        %669 = vmatpush1.msra.mxu0 0.0
        %670 = vmatprep.subr.mxu0 0.0
        %671 = vmatpush1.msra.mxu0 0.0
        %672 = vmatprep.subr.mxu0 0.0
        %673 = vmatpush1.msra.mxu0 0.0
        %674 = vmatprep.subr.mxu0 0.0
        %675 = vmatpush1.msra.mxu0 0.0
        %676 = vmatprep.subr.mxu0 0.0
        %677 = vmatpush1.msra.mxu0 0.0
        %678 = vmatprep.subr.mxu0 0.0
        %679 = vmatpush1.msra.mxu0 0.0
        %680 = vmatprep.subr.mxu0 0.0
        %681 = vmatpush1.msra.mxu0 0.0
        %682 = vmatprep.subr.mxu0 0.0
        %683 = vmatpush1.msra.mxu0 0.0
        %684 = vmatprep.subr.mxu0 0.0
        %v685 = vand.u32 %v181, 4294901760
        %686 = vmatpush1.msra.mxu0 %v685
        %687 = vmatprep.subr.mxu0 0.0
        %688 = vmatpush2.msra.mxu0 0.0
        %689 = vmatprep.subr.mxu0 0.0
        %690 = vmatpush2.msra.mxu0 0.0
        %691 = vmatprep.subr.mxu0 0.0
        %692 = vmatpush2.msra.mxu0 0.0
        %693 = vmatprep.subr.mxu0 0.0
        %694 = vmatpush2.msra.mxu0 0.0
        %695 = vmatprep.subr.mxu0 0.0
        %696 = vmatpush2.msra.mxu0 0.0
        %697 = vmatprep.subr.mxu0 0.0
        %698 = vmatpush2.msra.mxu0 0.0
        %699 = vmatprep.subr.mxu0 0.0
        %700 = vmatpush2.msra.mxu0 0.0
        %701 = vmatprep.subr.mxu0 0.0
        %702 = vmatpush2.msra.mxu0 0.0
        %703 = vmatprep.subr.mxu0 0.0
        %704 = vmatpush2.msra.mxu0 0.0
        %705 = vmatprep.subr.mxu0 0.0
        %706 = vmatpush2.msra.mxu0 0.0
        %707 = vmatprep.subr.mxu0 0.0
        %708 = vmatpush2.msra.mxu0 0.0
        %709 = vmatprep.subr.mxu0 0.0
        %710 = vmatpush2.msra.mxu0 0.0
        %711 = vmatprep.subr.mxu0 0.0
        %712 = vmatpush2.msra.mxu0 0.0
        %713 = vmatprep.subr.mxu0 0.0
        %714 = vmatpush2.msra.mxu0 0.0
        %715 = vmatprep.subr.mxu0 0.0
        %716 = vmatpush2.msra.mxu0 0.0
        %717 = vmatprep.subr.mxu0 0.0
        %718 = vmatpush2.msra.mxu0 0.0
        %719 = vmatprep.mubr.f32.mxu0 0.0
        %v720 = vand.u32 %v198, 4294901760
        %721 = vmatmul.mubr.f32.gmra.mxu0 %v720
        %v722 = vpop.f32.mrf.mxu0
        %v723 = vadd.f32 %v639, %v722
        %v724 = vpop.f32.mrf.mxu0
        %725 = vmatprep.mubr.f32.mxu0 0.0
        %v726 = vand.u32 %v201, 4294901760
        %727 = vmatmul.mubr.f32.gmra.mxu0 %v726
        %v728 = vpop.f32.mrf.mxu0
        %v729 = vadd.f32 %v645, %v728
        %v730 = vpop.f32.mrf.mxu0
        %731 = vmatprep.mubr.f32.mxu0 0.0
        %v732 = vand.u32 %v204, 4294901760
        %733 = vmatmul.mubr.f32.gmra.mxu0 %v732
        %v734 = vpop.f32.mrf.mxu0
        %v735 = vadd.f32 %v651, %v734
        %v736 = vpop.f32.mrf.mxu0
        %737 = vdwg.mxu0
        %v738 = vmax.f32 %v723, 0.0
        %v739 = vmax.f32 %v729, 0.0
        %v740 = vmax.f32 %v735, 0.0
        %v744 = vlaneseq
        %v745 = vshrl.u32 %v744, 7
        %v746 = vadd.s32 %v745, 8
        %v747 = vadd.s32 %v745, 16
        %v748 = vand.u32 %v738, 4294967264
        %v749 = vand.u32 %v739, 4294967264
        %v750 = vand.u32 %v740, 4294967264
        %v751 = vor.u32 %v748, %v745
        %v752 = vor.u32 %v749, %v746
        %v753 = vor.u32 %v750, %v747
        %vm754 = vcmp.ge.s32.totalorder %v745, 20
        %vm755 = vcmp.ge.s32.totalorder %v746, 20
        %vm756 = vcmp.ge.s32.totalorder %v747, 20
        %v757 = vsel %vm754, 2147483647, %v751
        %v758 = vsel %vm755, 2147483647, %v752
        %v759 = vsel %vm756, 2147483647, %v753
        %vm760 = vcmp.lt.s32.totalorder %v757, %v758
        %v761 = vsel %vm760, %v757, %v758
        %vm762 = vcmp.lt.s32.totalorder %v761, %v759
        %v763 = vsel %vm762, %v761, %v759
        %v764 = vrot.slane %v763, 4
        %vm765 = vcmp.lt.s32.totalorder %v763, %v764
        %v766 = vsel %vm765, %v763, %v764
        %v767 = vrot.slane %v766, 2
        %vm768 = vcmp.lt.s32.totalorder %v766, %v767
        %v769 = vsel %vm768, %v766, %v767
        %v770 = vrot.slane %v769, 1
        %vm771 = vcmp.lt.s32.totalorder %v769, %v770
        %v772 = vsel %vm771, %v769, %v770
        %vm773 = vcmp.eq.s32.totalorder %v757, %v772
        %vm774 = vcmp.eq.s32.totalorder %v758, %v772
        %vm775 = vcmp.eq.s32.totalorder %v759, %v772
        %v776 = vsel %vm773, 1, 0
        %v777 = vsel %vm774, 1, 0
        %v778 = vsel %vm775, 1, 0
        %v779 = vcvt.s32.f32 %v776
        %v780 = vcvt.s32.f32 %v777
        %v781 = vcvt.s32.f32 %v778
        %v782 = vadd.f32 %v779, 0.0
        %v783 = vadd.f32 %v780, 0.0
        %v784 = vadd.f32 %v781, 0.0
        %v785 = vsel %vm773, 2147483647, %v757
        %v786 = vsel %vm774, 2147483647, %v758
        %v787 = vsel %vm775, 2147483647, %v759
        %vm788 = vcmp.lt.s32.totalorder %v785, %v786
        %v789 = vsel %vm788, %v785, %v786
        %vm790 = vcmp.lt.s32.totalorder %v789, %v787
        %v791 = vsel %vm790, %v789, %v787
        %v792 = vrot.slane %v791, 4
        %vm793 = vcmp.lt.s32.totalorder %v791, %v792
        %v794 = vsel %vm793, %v791, %v792
        %v795 = vrot.slane %v794, 2
        %vm796 = vcmp.lt.s32.totalorder %v794, %v795
        %v797 = vsel %vm796, %v794, %v795
        %v798 = vrot.slane %v797, 1
        %vm799 = vcmp.lt.s32.totalorder %v797, %v798
        %v800 = vsel %vm799, %v797, %v798
        %vm801 = vcmp.eq.s32.totalorder %v785, %v800
        %vm802 = vcmp.eq.s32.totalorder %v786, %v800
        %vm803 = vcmp.eq.s32.totalorder %v787, %v800
        %v804 = vsel %vm801, 1, 0
        %v805 = vsel %vm802, 1, 0
        %v806 = vsel %vm803, 1, 0
        %v807 = vcvt.s32.f32 %v804
        %v808 = vcvt.s32.f32 %v805
        %v809 = vcvt.s32.f32 %v806
        %v810 = vadd.f32 %v782, %v807
        %v811 = vadd.f32 %v783, %v808
        %v812 = vadd.f32 %v784, %v809
        %v813 = vsel %vm801, 2147483647, %v785
        %v814 = vsel %vm802, 2147483647, %v786
        %v815 = vsel %vm803, 2147483647, %v787
        %vm816 = vcmp.lt.s32.totalorder %v813, %v814
        %v817 = vsel %vm816, %v813, %v814
        %vm818 = vcmp.lt.s32.totalorder %v817, %v815
        %v819 = vsel %vm818, %v817, %v815
        %v820 = vrot.slane %v819, 4
        %vm821 = vcmp.lt.s32.totalorder %v819, %v820
        %v822 = vsel %vm821, %v819, %v820
        %v823 = vrot.slane %v822, 2
        %vm824 = vcmp.lt.s32.totalorder %v822, %v823
        %v825 = vsel %vm824, %v822, %v823
        %v826 = vrot.slane %v825, 1
        %vm827 = vcmp.lt.s32.totalorder %v825, %v826
        %v828 = vsel %vm827, %v825, %v826
        %vm829 = vcmp.eq.s32.totalorder %v813, %v828
        %vm830 = vcmp.eq.s32.totalorder %v814, %v828
        %vm831 = vcmp.eq.s32.totalorder %v815, %v828
        %v832 = vsel %vm829, 1, 0
        %v833 = vsel %vm830, 1, 0
        %v834 = vsel %vm831, 1, 0
        %v835 = vcvt.s32.f32 %v832
        %v836 = vcvt.s32.f32 %v833
        %v837 = vcvt.s32.f32 %v834
        %v838 = vadd.f32 %v810, %v835
        %v839 = vadd.f32 %v811, %v836
        %v840 = vadd.f32 %v812, %v837
        %vm841 = vcmask 195584
        %v843 = vsel %vm841, %v185, 0
        %v846 = vsel %vm841, %v186, 0
        %v849 = vsel %vm841, %v187, 0
        %851 = vmatprep.subr.mxu0 0.0
        %852 = vmatpush1.msra.mxu0 0.0
        %853 = vmatprep.subr.mxu0 0.0
        %854 = vmatpush1.msra.mxu0 0.0
        %855 = vmatprep.subr.mxu0 0.0
        %856 = vmatpush1.msra.mxu0 0.0
        %857 = vmatprep.subr.mxu0 0.0
        %858 = vmatpush1.msra.mxu0 0.0
        %859 = vmatprep.subr.mxu0 0.0
        %860 = vmatpush1.msra.mxu0 0.0
        %861 = vmatprep.subr.mxu0 0.0
        %862 = vmatpush1.msra.mxu0 0.0
        %863 = vmatprep.subr.mxu0 0.0
        %864 = vmatpush1.msra.mxu0 0.0
        %865 = vmatprep.subr.mxu0 0.0
        %866 = vmatpush1.msra.mxu0 0.0
        %867 = vmatprep.subr.mxu0 0.0
        %868 = vmatpush1.msra.mxu0 0.0
        %869 = vmatprep.subr.mxu0 0.0
        %870 = vmatpush1.msra.mxu0 0.0
        %871 = vmatprep.subr.mxu0 0.0
        %872 = vmatpush1.msra.mxu0 0.0
        %873 = vmatprep.subr.mxu0 0.0
        %874 = vmatpush1.msra.mxu0 0.0
        %875 = vmatprep.subr.mxu0 0.0
        %876 = vmatpush1.msra.mxu0 0.0
        %877 = vmatprep.subr.mxu0 0.0
        %v878 = vand.u32 %v840, 4294901760
        %879 = vmatpush1.msra.mxu0 %v878
        %880 = vmatprep.subr.mxu0 0.0
        %v881 = vand.u32 %v839, 4294901760
        %882 = vmatpush1.msra.mxu0 %v881
        %883 = vmatprep.subr.mxu0 0.0
        %v884 = vand.u32 %v838, 4294901760
        %885 = vmatpush1.msra.mxu0 %v884
        %886 = vmatprep.subr.mxu0 0.0
        %887 = vmatpush2.msra.mxu0 0.0
        %888 = vmatprep.subr.mxu0 0.0
        %889 = vmatpush2.msra.mxu0 0.0
        %890 = vmatprep.subr.mxu0 0.0
        %891 = vmatpush2.msra.mxu0 0.0
        %892 = vmatprep.subr.mxu0 0.0
        %893 = vmatpush2.msra.mxu0 0.0
        %894 = vmatprep.subr.mxu0 0.0
        %895 = vmatpush2.msra.mxu0 0.0
        %896 = vmatprep.subr.mxu0 0.0
        %897 = vmatpush2.msra.mxu0 0.0
        %898 = vmatprep.subr.mxu0 0.0
        %899 = vmatpush2.msra.mxu0 0.0
        %900 = vmatprep.subr.mxu0 0.0
        %901 = vmatpush2.msra.mxu0 0.0
        %902 = vmatprep.subr.mxu0 0.0
        %903 = vmatpush2.msra.mxu0 0.0
        %904 = vmatprep.subr.mxu0 0.0
        %905 = vmatpush2.msra.mxu0 0.0
        %906 = vmatprep.subr.mxu0 0.0
        %907 = vmatpush2.msra.mxu0 0.0
        %908 = vmatprep.subr.mxu0 0.0
        %909 = vmatpush2.msra.mxu0 0.0
        %910 = vmatprep.subr.mxu0 0.0
        %911 = vmatpush2.msra.mxu0 0.0
        %912 = vmatprep.subr.mxu0 0.0
        %913 = vmatpush2.msra.mxu0 0.0
        %914 = vmatprep.subr.mxu0 0.0
        %915 = vmatpush2.msra.mxu0 0.0
        %916 = vmatprep.subr.mxu0 0.0
        %917 = vmatpush2.msra.mxu0 0.0
        %918 = vmatprep.mubr.f32.mxu0 0.0
        %v919 = vand.u32 %v843, 4294901760
        %v920 = vsub.f32 %v843, %v919
        %v921 = vand.u32 %v920, 4294901760
        %v922 = vsub.f32 %v920, %v921
        %v923 = vand.u32 %v922, 4294901760
        %924 = vmatmul.mubr.f32.gmra.mxu0 %v923
        %v925 = vpop.f32.mrf.mxu0
        %v926 = vadd.f32 0.0, %v925
        %v927 = vpop.f32.mrf.mxu0
        %928 = vmatprep.mubr.f32.mxu0 0.0
        %v929 = vand.u32 %v846, 4294901760
        %v930 = vsub.f32 %v846, %v929
        %v931 = vand.u32 %v930, 4294901760
        %v932 = vsub.f32 %v930, %v931
        %v933 = vand.u32 %v932, 4294901760
        %934 = vmatmul.mubr.f32.gmra.mxu0 %v933
        %v935 = vpop.f32.mrf.mxu0
        %v936 = vadd.f32 0.0, %v935
        %v937 = vpop.f32.mrf.mxu0
        %938 = vmatprep.mubr.f32.mxu0 0.0
        %v939 = vand.u32 %v849, 4294901760
        %v940 = vsub.f32 %v849, %v939
        %v941 = vand.u32 %v940, 4294901760
        %v942 = vsub.f32 %v940, %v941
        %v943 = vand.u32 %v942, 4294901760
        %944 = vmatmul.mubr.f32.gmra.mxu0 %v943
        %v945 = vpop.f32.mrf.mxu0
        %v946 = vadd.f32 0.0, %v945
        %v947 = vpop.f32.mrf.mxu0
        %948 = vdwg.mxu0
        %949 = vmatprep.subr.mxu0 0.0
        %950 = vmatpush1.msra.mxu0 0.0
        %951 = vmatprep.subr.mxu0 0.0
        %952 = vmatpush1.msra.mxu0 0.0
        %953 = vmatprep.subr.mxu0 0.0
        %954 = vmatpush1.msra.mxu0 0.0
        %955 = vmatprep.subr.mxu0 0.0
        %956 = vmatpush1.msra.mxu0 0.0
        %957 = vmatprep.subr.mxu0 0.0
        %958 = vmatpush1.msra.mxu0 0.0
        %959 = vmatprep.subr.mxu0 0.0
        %960 = vmatpush1.msra.mxu0 0.0
        %961 = vmatprep.subr.mxu0 0.0
        %962 = vmatpush1.msra.mxu0 0.0
        %963 = vmatprep.subr.mxu0 0.0
        %964 = vmatpush1.msra.mxu0 0.0
        %965 = vmatprep.subr.mxu0 0.0
        %966 = vmatpush1.msra.mxu0 0.0
        %967 = vmatprep.subr.mxu0 0.0
        %968 = vmatpush1.msra.mxu0 0.0
        %969 = vmatprep.subr.mxu0 0.0
        %970 = vmatpush1.msra.mxu0 0.0
        %971 = vmatprep.subr.mxu0 0.0
        %972 = vmatpush1.msra.mxu0 0.0
        %973 = vmatprep.subr.mxu0 0.0
        %974 = vmatpush1.msra.mxu0 0.0
        %975 = vmatprep.subr.mxu0 0.0
        %v976 = vand.u32 %v840, 4294901760
        %v977 = vsub.f32 %v840, %v976
        %v978 = vand.u32 %v977, 4294901760
        %v979 = vsub.f32 %v977, %v978
        %v980 = vand.u32 %v979, 4294901760
        %981 = vmatpush1.msra.mxu0 %v980
        %982 = vmatprep.subr.mxu0 0.0
        %v983 = vand.u32 %v839, 4294901760
        %v984 = vsub.f32 %v839, %v983
        %v985 = vand.u32 %v984, 4294901760
        %v986 = vsub.f32 %v984, %v985
        %v987 = vand.u32 %v986, 4294901760
        %988 = vmatpush1.msra.mxu0 %v987
        %989 = vmatprep.subr.mxu0 0.0
        %v990 = vand.u32 %v838, 4294901760
        %v991 = vsub.f32 %v838, %v990
        %v992 = vand.u32 %v991, 4294901760
        %v993 = vsub.f32 %v991, %v992
        %v994 = vand.u32 %v993, 4294901760
        %995 = vmatpush1.msra.mxu0 %v994
        %996 = vmatprep.subr.mxu0 0.0
        %997 = vmatpush2.msra.mxu0 0.0
        %998 = vmatprep.subr.mxu0 0.0
        %999 = vmatpush2.msra.mxu0 0.0
        %1000 = vmatprep.subr.mxu0 0.0
        %1001 = vmatpush2.msra.mxu0 0.0
        %1002 = vmatprep.subr.mxu0 0.0
        %1003 = vmatpush2.msra.mxu0 0.0
        %1004 = vmatprep.subr.mxu0 0.0
        %1005 = vmatpush2.msra.mxu0 0.0
        %1006 = vmatprep.subr.mxu0 0.0
        %1007 = vmatpush2.msra.mxu0 0.0
        %1008 = vmatprep.subr.mxu0 0.0
        %1009 = vmatpush2.msra.mxu0 0.0
        %1010 = vmatprep.subr.mxu0 0.0
        %1011 = vmatpush2.msra.mxu0 0.0
        %1012 = vmatprep.subr.mxu0 0.0
        %1013 = vmatpush2.msra.mxu0 0.0
        %1014 = vmatprep.subr.mxu0 0.0
        %1015 = vmatpush2.msra.mxu0 0.0
        %1016 = vmatprep.subr.mxu0 0.0
        %1017 = vmatpush2.msra.mxu0 0.0
        %1018 = vmatprep.subr.mxu0 0.0
        %1019 = vmatpush2.msra.mxu0 0.0
        %1020 = vmatprep.subr.mxu0 0.0
        %1021 = vmatpush2.msra.mxu0 0.0
        %1022 = vmatprep.subr.mxu0 0.0
        %1023 = vmatpush2.msra.mxu0 0.0
        %1024 = vmatprep.subr.mxu0 0.0
        %1025 = vmatpush2.msra.mxu0 0.0
        %1026 = vmatprep.subr.mxu0 0.0
        %1027 = vmatpush2.msra.mxu0 0.0
        %1028 = vmatprep.mubr.f32.mxu0 0.0
        %v1029 = vand.u32 %v843, 4294901760
        %1030 = vmatmul.mubr.f32.gmra.mxu0 %v1029
        %v1031 = vpop.f32.mrf.mxu0
        %v1032 = vadd.f32 %v926, %v1031
        %v1033 = vpop.f32.mrf.mxu0
        %1034 = vmatprep.mubr.f32.mxu0 0.0
        %v1035 = vand.u32 %v846, 4294901760
        %1036 = vmatmul.mubr.f32.gmra.mxu0 %v1035
        %v1037 = vpop.f32.mrf.mxu0
        %v1038 = vadd.f32 %v936, %v1037
        %v1039 = vpop.f32.mrf.mxu0
        %1040 = vmatprep.mubr.f32.mxu0 0.0
        %v1041 = vand.u32 %v849, 4294901760
        %1042 = vmatmul.mubr.f32.gmra.mxu0 %v1041
        %v1043 = vpop.f32.mrf.mxu0
        %v1044 = vadd.f32 %v946, %v1043
        %v1045 = vpop.f32.mrf.mxu0
        %1046 = vdwg.mxu0
        %1047 = vmatprep.subr.mxu0 0.0
        %1048 = vmatpush1.msra.mxu0 0.0
        %1049 = vmatprep.subr.mxu0 0.0
        %1050 = vmatpush1.msra.mxu0 0.0
        %1051 = vmatprep.subr.mxu0 0.0
        %1052 = vmatpush1.msra.mxu0 0.0
        %1053 = vmatprep.subr.mxu0 0.0
        %1054 = vmatpush1.msra.mxu0 0.0
        %1055 = vmatprep.subr.mxu0 0.0
        %1056 = vmatpush1.msra.mxu0 0.0
        %1057 = vmatprep.subr.mxu0 0.0
        %1058 = vmatpush1.msra.mxu0 0.0
        %1059 = vmatprep.subr.mxu0 0.0
        %1060 = vmatpush1.msra.mxu0 0.0
        %1061 = vmatprep.subr.mxu0 0.0
        %1062 = vmatpush1.msra.mxu0 0.0
        %1063 = vmatprep.subr.mxu0 0.0
        %1064 = vmatpush1.msra.mxu0 0.0
        %1065 = vmatprep.subr.mxu0 0.0
        %1066 = vmatpush1.msra.mxu0 0.0
        %1067 = vmatprep.subr.mxu0 0.0
        %1068 = vmatpush1.msra.mxu0 0.0
        %1069 = vmatprep.subr.mxu0 0.0
        %1070 = vmatpush1.msra.mxu0 0.0
        %1071 = vmatprep.subr.mxu0 0.0
        %1072 = vmatpush1.msra.mxu0 0.0
        %1073 = vmatprep.subr.mxu0 0.0
        %v1074 = vand.u32 %v840, 4294901760
        %v1075 = vsub.f32 %v840, %v1074
        %1076 = vmatpush1.msra.mxu0 %v1075
        %1077 = vmatprep.subr.mxu0 0.0
        %v1078 = vand.u32 %v839, 4294901760
        %v1079 = vsub.f32 %v839, %v1078
        %1080 = vmatpush1.msra.mxu0 %v1079
        %1081 = vmatprep.subr.mxu0 0.0
        %v1082 = vand.u32 %v838, 4294901760
        %v1083 = vsub.f32 %v838, %v1082
        %1084 = vmatpush1.msra.mxu0 %v1083
        %1085 = vmatprep.subr.mxu0 0.0
        %1086 = vmatpush2.msra.mxu0 0.0
        %1087 = vmatprep.subr.mxu0 0.0
        %1088 = vmatpush2.msra.mxu0 0.0
        %1089 = vmatprep.subr.mxu0 0.0
        %1090 = vmatpush2.msra.mxu0 0.0
        %1091 = vmatprep.subr.mxu0 0.0
        %1092 = vmatpush2.msra.mxu0 0.0
        %1093 = vmatprep.subr.mxu0 0.0
        %1094 = vmatpush2.msra.mxu0 0.0
        %1095 = vmatprep.subr.mxu0 0.0
        %1096 = vmatpush2.msra.mxu0 0.0
        %1097 = vmatprep.subr.mxu0 0.0
        %1098 = vmatpush2.msra.mxu0 0.0
        %1099 = vmatprep.subr.mxu0 0.0
        %1100 = vmatpush2.msra.mxu0 0.0
        %1101 = vmatprep.subr.mxu0 0.0
        %1102 = vmatpush2.msra.mxu0 0.0
        %1103 = vmatprep.subr.mxu0 0.0
        %1104 = vmatpush2.msra.mxu0 0.0
        %1105 = vmatprep.subr.mxu0 0.0
        %1106 = vmatpush2.msra.mxu0 0.0
        %1107 = vmatprep.subr.mxu0 0.0
        %1108 = vmatpush2.msra.mxu0 0.0
        %1109 = vmatprep.subr.mxu0 0.0
        %1110 = vmatpush2.msra.mxu0 0.0
        %1111 = vmatprep.subr.mxu0 0.0
        %1112 = vmatpush2.msra.mxu0 0.0
        %1113 = vmatprep.subr.mxu0 0.0
        %1114 = vmatpush2.msra.mxu0 0.0
        %1115 = vmatprep.subr.mxu0 0.0
        %1116 = vmatpush2.msra.mxu0 0.0
        %1117 = vmatprep.mubr.f32.mxu0 0.0
        %v1118 = vand.u32 %v843, 4294901760
        %v1119 = vsub.f32 %v843, %v1118
        %1120 = vmatmul.mubr.f32.gmra.mxu0 %v1119
        %v1121 = vpop.f32.mrf.mxu0
        %v1122 = vadd.f32 %v1032, %v1121
        %v1123 = vpop.f32.mrf.mxu0
        %1124 = vmatprep.mubr.f32.mxu0 0.0
        %v1125 = vand.u32 %v846, 4294901760
        %v1126 = vsub.f32 %v846, %v1125
        %1127 = vmatmul.mubr.f32.gmra.mxu0 %v1126
        %v1128 = vpop.f32.mrf.mxu0
        %v1129 = vadd.f32 %v1038, %v1128
        %v1130 = vpop.f32.mrf.mxu0
        %1131 = vmatprep.mubr.f32.mxu0 0.0
        %v1132 = vand.u32 %v849, 4294901760
        %v1133 = vsub.f32 %v849, %v1132
        %1134 = vmatmul.mubr.f32.gmra.mxu0 %v1133
        %v1135 = vpop.f32.mrf.mxu0
        %v1136 = vadd.f32 %v1044, %v1135
        %v1137 = vpop.f32.mrf.mxu0
        %1138 = vdwg.mxu0
        %1139 = vmatprep.subr.mxu0 0.0
        %1140 = vmatpush1.msra.mxu0 0.0
        %1141 = vmatprep.subr.mxu0 0.0
        %1142 = vmatpush1.msra.mxu0 0.0
        %1143 = vmatprep.subr.mxu0 0.0
        %1144 = vmatpush1.msra.mxu0 0.0
        %1145 = vmatprep.subr.mxu0 0.0
        %1146 = vmatpush1.msra.mxu0 0.0
        %1147 = vmatprep.subr.mxu0 0.0
        %1148 = vmatpush1.msra.mxu0 0.0
        %1149 = vmatprep.subr.mxu0 0.0
        %1150 = vmatpush1.msra.mxu0 0.0
        %1151 = vmatprep.subr.mxu0 0.0
        %1152 = vmatpush1.msra.mxu0 0.0
        %1153 = vmatprep.subr.mxu0 0.0
        %1154 = vmatpush1.msra.mxu0 0.0
        %1155 = vmatprep.subr.mxu0 0.0
        %1156 = vmatpush1.msra.mxu0 0.0
        %1157 = vmatprep.subr.mxu0 0.0
        %1158 = vmatpush1.msra.mxu0 0.0
        %1159 = vmatprep.subr.mxu0 0.0
        %1160 = vmatpush1.msra.mxu0 0.0
        %1161 = vmatprep.subr.mxu0 0.0
        %1162 = vmatpush1.msra.mxu0 0.0
        %1163 = vmatprep.subr.mxu0 0.0
        %1164 = vmatpush1.msra.mxu0 0.0
        %1165 = vmatprep.subr.mxu0 0.0
        %v1166 = vand.u32 %v840, 4294901760
        %1167 = vmatpush1.msra.mxu0 %v1166
        %1168 = vmatprep.subr.mxu0 0.0
        %v1169 = vand.u32 %v839, 4294901760
        %1170 = vmatpush1.msra.mxu0 %v1169
        %1171 = vmatprep.subr.mxu0 0.0
        %v1172 = vand.u32 %v838, 4294901760
        %1173 = vmatpush1.msra.mxu0 %v1172
        %1174 = vmatprep.subr.mxu0 0.0
        %1175 = vmatpush2.msra.mxu0 0.0
        %1176 = vmatprep.subr.mxu0 0.0
        %1177 = vmatpush2.msra.mxu0 0.0
        %1178 = vmatprep.subr.mxu0 0.0
        %1179 = vmatpush2.msra.mxu0 0.0
        %1180 = vmatprep.subr.mxu0 0.0
        %1181 = vmatpush2.msra.mxu0 0.0
        %1182 = vmatprep.subr.mxu0 0.0
        %1183 = vmatpush2.msra.mxu0 0.0
        %1184 = vmatprep.subr.mxu0 0.0
        %1185 = vmatpush2.msra.mxu0 0.0
        %1186 = vmatprep.subr.mxu0 0.0
        %1187 = vmatpush2.msra.mxu0 0.0
        %1188 = vmatprep.subr.mxu0 0.0
        %1189 = vmatpush2.msra.mxu0 0.0
        %1190 = vmatprep.subr.mxu0 0.0
        %1191 = vmatpush2.msra.mxu0 0.0
        %1192 = vmatprep.subr.mxu0 0.0
        %1193 = vmatpush2.msra.mxu0 0.0
        %1194 = vmatprep.subr.mxu0 0.0
        %1195 = vmatpush2.msra.mxu0 0.0
        %1196 = vmatprep.subr.mxu0 0.0
        %1197 = vmatpush2.msra.mxu0 0.0
        %1198 = vmatprep.subr.mxu0 0.0
        %1199 = vmatpush2.msra.mxu0 0.0
        %1200 = vmatprep.subr.mxu0 0.0
        %1201 = vmatpush2.msra.mxu0 0.0
        %1202 = vmatprep.subr.mxu0 0.0
        %1203 = vmatpush2.msra.mxu0 0.0
        %1204 = vmatprep.subr.mxu0 0.0
        %1205 = vmatpush2.msra.mxu0 0.0
        %1206 = vmatprep.mubr.f32.mxu0 0.0
        %v1207 = vand.u32 %v843, 4294901760
        %v1208 = vsub.f32 %v843, %v1207
        %v1209 = vand.u32 %v1208, 4294901760
        %1210 = vmatmul.mubr.f32.gmra.mxu0 %v1209
        %v1211 = vpop.f32.mrf.mxu0
        %v1212 = vadd.f32 %v1122, %v1211
        %v1213 = vpop.f32.mrf.mxu0
        %1214 = vmatprep.mubr.f32.mxu0 0.0
        %v1215 = vand.u32 %v846, 4294901760
        %v1216 = vsub.f32 %v846, %v1215
        %v1217 = vand.u32 %v1216, 4294901760
        %1218 = vmatmul.mubr.f32.gmra.mxu0 %v1217
        %v1219 = vpop.f32.mrf.mxu0
        %v1220 = vadd.f32 %v1129, %v1219
        %v1221 = vpop.f32.mrf.mxu0
        %1222 = vmatprep.mubr.f32.mxu0 0.0
        %v1223 = vand.u32 %v849, 4294901760
        %v1224 = vsub.f32 %v849, %v1223
        %v1225 = vand.u32 %v1224, 4294901760
        %1226 = vmatmul.mubr.f32.gmra.mxu0 %v1225
        %v1227 = vpop.f32.mrf.mxu0
        %v1228 = vadd.f32 %v1136, %v1227
        %v1229 = vpop.f32.mrf.mxu0
        %1230 = vdwg.mxu0
        %1231 = vmatprep.subr.mxu0 0.0
        %1232 = vmatpush1.msra.mxu0 0.0
        %1233 = vmatprep.subr.mxu0 0.0
        %1234 = vmatpush1.msra.mxu0 0.0
        %1235 = vmatprep.subr.mxu0 0.0
        %1236 = vmatpush1.msra.mxu0 0.0
        %1237 = vmatprep.subr.mxu0 0.0
        %1238 = vmatpush1.msra.mxu0 0.0
        %1239 = vmatprep.subr.mxu0 0.0
        %1240 = vmatpush1.msra.mxu0 0.0
        %1241 = vmatprep.subr.mxu0 0.0
        %1242 = vmatpush1.msra.mxu0 0.0
        %1243 = vmatprep.subr.mxu0 0.0
        %1244 = vmatpush1.msra.mxu0 0.0
        %1245 = vmatprep.subr.mxu0 0.0
        %1246 = vmatpush1.msra.mxu0 0.0
        %1247 = vmatprep.subr.mxu0 0.0
        %1248 = vmatpush1.msra.mxu0 0.0
        %1249 = vmatprep.subr.mxu0 0.0
        %1250 = vmatpush1.msra.mxu0 0.0
        %1251 = vmatprep.subr.mxu0 0.0
        %1252 = vmatpush1.msra.mxu0 0.0
        %1253 = vmatprep.subr.mxu0 0.0
        %1254 = vmatpush1.msra.mxu0 0.0
        %1255 = vmatprep.subr.mxu0 0.0
        %1256 = vmatpush1.msra.mxu0 0.0
        %1257 = vmatprep.subr.mxu0 0.0
        %v1258 = vand.u32 %v840, 4294901760
        %v1259 = vsub.f32 %v840, %v1258
        %v1260 = vand.u32 %v1259, 4294901760
        %1261 = vmatpush1.msra.mxu0 %v1260
        %1262 = vmatprep.subr.mxu0 0.0
        %v1263 = vand.u32 %v839, 4294901760
        %v1264 = vsub.f32 %v839, %v1263
        %v1265 = vand.u32 %v1264, 4294901760
        %1266 = vmatpush1.msra.mxu0 %v1265
        %1267 = vmatprep.subr.mxu0 0.0
        %v1268 = vand.u32 %v838, 4294901760
        %v1269 = vsub.f32 %v838, %v1268
        %v1270 = vand.u32 %v1269, 4294901760
        %1271 = vmatpush1.msra.mxu0 %v1270
        %1272 = vmatprep.subr.mxu0 0.0
        %1273 = vmatpush2.msra.mxu0 0.0
        %1274 = vmatprep.subr.mxu0 0.0
        %1275 = vmatpush2.msra.mxu0 0.0
        %1276 = vmatprep.subr.mxu0 0.0
        %1277 = vmatpush2.msra.mxu0 0.0
        %1278 = vmatprep.subr.mxu0 0.0
        %1279 = vmatpush2.msra.mxu0 0.0
        %1280 = vmatprep.subr.mxu0 0.0
        %1281 = vmatpush2.msra.mxu0 0.0
        %1282 = vmatprep.subr.mxu0 0.0
        %1283 = vmatpush2.msra.mxu0 0.0
        %1284 = vmatprep.subr.mxu0 0.0
        %1285 = vmatpush2.msra.mxu0 0.0
        %1286 = vmatprep.subr.mxu0 0.0
        %1287 = vmatpush2.msra.mxu0 0.0
        %1288 = vmatprep.subr.mxu0 0.0
        %1289 = vmatpush2.msra.mxu0 0.0
        %1290 = vmatprep.subr.mxu0 0.0
        %1291 = vmatpush2.msra.mxu0 0.0
        %1292 = vmatprep.subr.mxu0 0.0
        %1293 = vmatpush2.msra.mxu0 0.0
        %1294 = vmatprep.subr.mxu0 0.0
        %1295 = vmatpush2.msra.mxu0 0.0
        %1296 = vmatprep.subr.mxu0 0.0
        %1297 = vmatpush2.msra.mxu0 0.0
        %1298 = vmatprep.subr.mxu0 0.0
        %1299 = vmatpush2.msra.mxu0 0.0
        %1300 = vmatprep.subr.mxu0 0.0
        %1301 = vmatpush2.msra.mxu0 0.0
        %1302 = vmatprep.subr.mxu0 0.0
        %1303 = vmatpush2.msra.mxu0 0.0
        %1304 = vmatprep.mubr.f32.mxu0 0.0
        %v1305 = vand.u32 %v843, 4294901760
        %1306 = vmatmul.mubr.f32.gmra.mxu0 %v1305
        %v1307 = vpop.f32.mrf.mxu0
        %v1308 = vadd.f32 %v1212, %v1307
        %v1309 = vpop.f32.mrf.mxu0
        %1310 = vmatprep.mubr.f32.mxu0 0.0
        %v1311 = vand.u32 %v846, 4294901760
        %1312 = vmatmul.mubr.f32.gmra.mxu0 %v1311
        %v1313 = vpop.f32.mrf.mxu0
        %v1314 = vadd.f32 %v1220, %v1313
        %v1315 = vpop.f32.mrf.mxu0
        %1316 = vmatprep.mubr.f32.mxu0 0.0
        %v1317 = vand.u32 %v849, 4294901760
        %1318 = vmatmul.mubr.f32.gmra.mxu0 %v1317
        %v1319 = vpop.f32.mrf.mxu0
        %v1320 = vadd.f32 %v1228, %v1319
        %v1321 = vpop.f32.mrf.mxu0
        %1322 = vdwg.mxu0
        %1323 = vmatprep.subr.mxu0 0.0
        %1324 = vmatpush1.msra.mxu0 0.0
        %1325 = vmatprep.subr.mxu0 0.0
        %1326 = vmatpush1.msra.mxu0 0.0
        %1327 = vmatprep.subr.mxu0 0.0
        %1328 = vmatpush1.msra.mxu0 0.0
        %1329 = vmatprep.subr.mxu0 0.0
        %1330 = vmatpush1.msra.mxu0 0.0
        %1331 = vmatprep.subr.mxu0 0.0
        %1332 = vmatpush1.msra.mxu0 0.0
        %1333 = vmatprep.subr.mxu0 0.0
        %1334 = vmatpush1.msra.mxu0 0.0
        %1335 = vmatprep.subr.mxu0 0.0
        %1336 = vmatpush1.msra.mxu0 0.0
        %1337 = vmatprep.subr.mxu0 0.0
        %1338 = vmatpush1.msra.mxu0 0.0
        %1339 = vmatprep.subr.mxu0 0.0
        %1340 = vmatpush1.msra.mxu0 0.0
        %1341 = vmatprep.subr.mxu0 0.0
        %1342 = vmatpush1.msra.mxu0 0.0
        %1343 = vmatprep.subr.mxu0 0.0
        %1344 = vmatpush1.msra.mxu0 0.0
        %1345 = vmatprep.subr.mxu0 0.0
        %1346 = vmatpush1.msra.mxu0 0.0
        %1347 = vmatprep.subr.mxu0 0.0
        %1348 = vmatpush1.msra.mxu0 0.0
        %1349 = vmatprep.subr.mxu0 0.0
        %v1350 = vand.u32 %v840, 4294901760
        %1351 = vmatpush1.msra.mxu0 %v1350
        %1352 = vmatprep.subr.mxu0 0.0
        %v1353 = vand.u32 %v839, 4294901760
        %1354 = vmatpush1.msra.mxu0 %v1353
        %1355 = vmatprep.subr.mxu0 0.0
        %v1356 = vand.u32 %v838, 4294901760
        %1357 = vmatpush1.msra.mxu0 %v1356
        %1358 = vmatprep.subr.mxu0 0.0
        %1359 = vmatpush2.msra.mxu0 0.0
        %1360 = vmatprep.subr.mxu0 0.0
        %1361 = vmatpush2.msra.mxu0 0.0
        %1362 = vmatprep.subr.mxu0 0.0
        %1363 = vmatpush2.msra.mxu0 0.0
        %1364 = vmatprep.subr.mxu0 0.0
        %1365 = vmatpush2.msra.mxu0 0.0
        %1366 = vmatprep.subr.mxu0 0.0
        %1367 = vmatpush2.msra.mxu0 0.0
        %1368 = vmatprep.subr.mxu0 0.0
        %1369 = vmatpush2.msra.mxu0 0.0
        %1370 = vmatprep.subr.mxu0 0.0
        %1371 = vmatpush2.msra.mxu0 0.0
        %1372 = vmatprep.subr.mxu0 0.0
        %1373 = vmatpush2.msra.mxu0 0.0
        %1374 = vmatprep.subr.mxu0 0.0
        %1375 = vmatpush2.msra.mxu0 0.0
        %1376 = vmatprep.subr.mxu0 0.0
        %1377 = vmatpush2.msra.mxu0 0.0
        %1378 = vmatprep.subr.mxu0 0.0
        %1379 = vmatpush2.msra.mxu0 0.0
        %1380 = vmatprep.subr.mxu0 0.0
        %1381 = vmatpush2.msra.mxu0 0.0
        %1382 = vmatprep.subr.mxu0 0.0
        %1383 = vmatpush2.msra.mxu0 0.0
        %1384 = vmatprep.subr.mxu0 0.0
        %1385 = vmatpush2.msra.mxu0 0.0
        %1386 = vmatprep.subr.mxu0 0.0
        %1387 = vmatpush2.msra.mxu0 0.0
        %1388 = vmatprep.subr.mxu0 0.0
        %1389 = vmatpush2.msra.mxu0 0.0
        %1390 = vmatprep.mubr.f32.mxu0 0.0
        %v1391 = vand.u32 %v843, 4294901760
        %1392 = vmatmul.mubr.f32.gmra.mxu0 %v1391
        %v1393 = vpop.f32.mrf.mxu0
        %v1394 = vadd.f32 %v1308, %v1393
        %v1395 = vpop.f32.mrf.mxu0
        %1396 = vmatprep.mubr.f32.mxu0 0.0
        %v1397 = vand.u32 %v846, 4294901760
        %1398 = vmatmul.mubr.f32.gmra.mxu0 %v1397
        %v1399 = vpop.f32.mrf.mxu0
        %v1400 = vadd.f32 %v1314, %v1399
        %v1401 = vpop.f32.mrf.mxu0
        %1402 = vmatprep.mubr.f32.mxu0 0.0
        %v1403 = vand.u32 %v849, 4294901760
        %1404 = vmatmul.mubr.f32.gmra.mxu0 %v1403
        %v1405 = vpop.f32.mrf.mxu0
        %v1406 = vadd.f32 %v1320, %v1405
        %v1407 = vpop.f32.mrf.mxu0
        %1408 = vdwg.mxu0
        %v1409 = vmul.f32 %v1394, %v181
        %v1410 = vmul.f32 %v1400, %v181
        %v1411 = vmul.f32 %v1406, %v181
        %v1412 = vrot.slane %v1409, 4
        %v1413 = vadd.f32 %v1409, %v1412
        %v1414 = vrot.slane %v1413, 2
        %v1415 = vadd.f32 %v1413, %v1414
        %v1416 = vrot.slane %v1415, 1
        %v1417 = vadd.f32 %v1415, %v1416
        %v1418 = vrot.slane %v1410, 4
        %v1419 = vadd.f32 %v1410, %v1418
        %v1420 = vrot.slane %v1419, 2
        %v1421 = vadd.f32 %v1419, %v1420
        %v1422 = vrot.slane %v1421, 1
        %v1423 = vadd.f32 %v1421, %v1422
        %v1424 = vrot.slane %v1411, 4
        %v1425 = vadd.f32 %v1411, %v1424
        %v1426 = vrot.slane %v1425, 2
        %v1427 = vadd.f32 %v1425, %v1426
        %v1428 = vrot.slane %v1427, 1
        %v1429 = vadd.f32 %v1427, %v1428
        %vm1433 = vcmask 1041409
        %v1434 = vsel %vm1433, %v1423, %v1417
        %vm1435 = vcmask 1042434
        %v1436 = vsel %vm1435, %v1429, %v1434
        %1438 = vst [vmem:[%s176] sm:$0x7] %v1436
        %s1439 = sand.u32 %s94, 1
        %s1440 = scalar_lea.sflag [#allocation4], %s1439
        %s1441 = sand.u32 %s94, 1
        %s1442 = smul.addr %s1441, 4
        %s1443 = scalar_lea.vmem [#allocation5], %s1442
        // Predicated region
        $region37: #{tpu_custom_call.1} parent=31 // pred_check
          %p1444 = pneg %p104
        $region38: #{tpu_custom_call.1} parent=31 // pred_check_branch
          %1446 = sbr.rel (%p1444) target = $region40
        $region39: #{tpu_custom_call.1} parent=31 // pred_region
          %s1448 = ssub.s32 64, 64
          %1449 = vsyncadd %s1440, %s1448
          %s1450 = smul.addr %s18, 64
          %s1451 = scalar_lea.hbm %s3, %s1450
          %s1453 = sshll.u32 %s1443, 4
          %s1454 = int_to_ptr.vmem [resolvable:$true] %s1453
          %1456 = dma.vmem_to_hbm [thread:$0]  %s1454, 64, %s1451, %s1440
        $region40: #{tpu_custom_call.1} parent=31 // pred_fallthru
          _
      $region32: #{tpu_custom_call.1} parent=5 // pred_fallthru
        _
      %p1457 = scmp.le.s32.totalorder 2, %s13
      // Predicated region
      $region41: #{tpu_custom_call.1} parent=5 // pred_check
        %p1458 = pneg %p1457
      $region42: #{tpu_custom_call.1} parent=5 // pred_check_branch
        %1460 = sbr.rel (%p1458) target = $region44
      $region43: #{tpu_custom_call.1} parent=5 // pred_region
        %s1461 = ssub.s32 %s13, 2
        // Predicated region
        $region45: #{tpu_custom_call.1} parent=43 // pred_check
          %p1462 = pneg %p110
        $region46: #{tpu_custom_call.1} parent=43 // pred_check_branch
          %1464 = sbr.rel (%p1462) target = $region48
        $region47: #{tpu_custom_call.1} parent=43 // pred_region
          %s1465 = sand.u32 %s95, 1
          %s1466 = scalar_lea.sflag [#allocation4], %s1465
          %s1467 = sand.u32 %s95, 1
          %s1468 = smul.addr %s1467, 4
          %s1469 = scalar_lea.vmem [#allocation5], %s1468
          %1470 = dma.done %s1466, 64
        $region48: #{tpu_custom_call.1} parent=43 // pred_fallthru
          _
      $region44: #{tpu_custom_call.1} parent=5 // pred_fallthru
        _
    $region6: #{tpu_custom_call.1} parent=1 // loop_footer
      %s17 = sadd.s32 1, %s13
    $region7: #{tpu_custom_call.1} parent=1 // loop_footer_branch
      %12 = sbr.rel target = $region3
    $region8: #{tpu_custom_call.1} parent=1 // loop_exit
      _
    %1471 = vsyncpa [#allocation3], 1
    %s1472 = scalar_lea.sflag [#allocation3], 1
    %1473 = vsyncpa %s1472, 1
    %1474 = vsyncpa [#allocation4], 1
    %s1475 = scalar_lea.sflag [#allocation4], 1
    %1476 = vsyncpa %s1475, 1

</llo_original>
